<compile_context>
chip_gen: v7x
topology: tpu7x:2x2x1
jax: 0.10.0
libtpu: 0.0.40
codegen_flags: <defaults>
</compile_context>

<pallas_src>
import functools
import math

import jax
import jax.numpy as jnp
from jax import lax
from jax.experimental import pallas as pl
from jax.experimental.pallas import tpu as pltpu


def _mha_kernel(x_ref, wq_ref, bq_ref, wk_ref, bk_ref, wv_ref, bv_ref,
                wo_ref, bo_ref, out_ref, attn_ref,
                k_scratch, v_scratch, ctx_scratch, *,
                num_heads, head_dim, block_q, seq_len, compute_dtype):
    """One grid step = one (batch, query-block).

    Grid is (B, S // block_q).  K/V for all heads are projected once per
    batch (qi == 0) into VMEM scratch; Q for all heads once per query block;
    per-head attention uses a static head loop; one K=E output projection.
    """
    qi = pl.program_id(1)

    # ---- K/V projection: ALL heads, full sequence, once per batch ----------
    @pl.when(qi == 0)
    def _():
        x_full = x_ref[0]                                      # (S, E)
        k_scratch[...] = (jnp.dot(x_full, wk_ref[...],
                                  preferred_element_type=jnp.float32)
                          + bk_ref[...]).astype(compute_dtype)
        v_scratch[...] = (jnp.dot(x_full, wv_ref[...],
                                  preferred_element_type=jnp.float32)
                          + bv_ref[...]).astype(compute_dtype)

    # ---- Q projection: ALL heads, this query block, once per q block -------
    if block_q == seq_len:
        xq = x_ref[0]                                          # (S, E)
    else:
        row0 = pl.multiple_of(qi * block_q, block_q)
        xq = x_ref[0, pl.ds(row0, block_q), :]                 # (block_q, E)
    # 1/sqrt(D) is already folded into wq / bq.
    q_all = (jnp.dot(xq, wq_ref[...], preferred_element_type=jnp.float32)
             + bq_ref[...]).astype(compute_dtype)              # (block_q, E)

    # ---- per-head attention (static loop; all slices compile-time) ---------
    for h in range(num_heads):
        lo = h * head_dim
        hi = lo + head_dim
        q_h = q_all[:, lo:hi]                                  # (block_q, D)
        k_h = k_scratch[:, lo:hi]                              # (S, D)
        v_h = v_scratch[:, lo:hi]                              # (S, D)

        # scores = q_h @ k_h^T (scale pre-folded); contract the head dim of
        # k directly so no explicit transpose is materialized.
        scores = lax.dot_general(
            q_h, k_h, dimension_numbers=(((1,), (1,)), ((), ())),
            preferred_element_type=jnp.float32)                # (block_q, S)

        # Numerically stable softmax in f32; exact division because the
        # attention weights are part of the module's returned outputs.
        m = jnp.max(scores, axis=-1, keepdims=True)
        e = jnp.exp(scores - m)
        attn = e / jnp.sum(e, axis=-1, keepdims=True)          # (block_q, S)

        attn_ref[0, h] = attn.astype(attn_ref.dtype)

        ctx_h = jnp.dot(attn.astype(compute_dtype), v_h,
                        preferred_element_type=jnp.float32)    # (block_q, D)
        ctx_scratch[:, lo:hi] = ctx_h.astype(compute_dtype)

    # ---- single K=E output projection over all heads ------------------------
    out = jnp.dot(ctx_scratch[...], wo_ref[...],
                  preferred_element_type=jnp.float32) + bo_ref[...]
    out_ref[0] = out.astype(out_ref.dtype)


def _vmem_bytes_estimate(S, E, H, block_q, compute_bytes, attn_bytes):
    """Rough per-step VMEM footprint model (double-buffered blocks + temps)."""
    weights = 4 * E * E * compute_bytes + 4 * E * 4
    x_buf = 2 * S * E * compute_bytes                 # per-batch x block (2 bufs)
    out_buf = 2 * block_q * E * 4
    attn_buf = 2 * H * block_q * S * attn_bytes
    scratch = 2 * S * E * compute_bytes + block_q * E * compute_bytes
    temps = 2 * block_q * E * 4 + 4 * block_q * S * 4
    return weights + x_buf + out_buf + attn_buf + scratch + temps


def multi_head_attention(x, params, num_heads, *, block_q=None,
                         compute_dtype=jnp.bfloat16,
                         attn_dtype=jnp.float32,
                         vmem_budget_bytes=48 * 1024 * 1024,
                         vmem_limit_bytes=None):
    """x: (B, S, E) float32.  params: PyTorch-layout wq/bq/wk/bk/wv/bv/wo/bo
    ((out, in) weights, (E,) biases).  Returns (output, attention_weights)."""
    B, S, E = x.shape
    assert E % num_heads == 0, "embed_dim must be divisible by num_heads"
    D = E // num_heads

    compute_bytes = jnp.dtype(compute_dtype).itemsize
    attn_bytes = jnp.dtype(attn_dtype).itemsize

    # ---- choose block_q from a VMEM budget (v7x 64 MiB safe by default) ----
    if block_q is None:
        cands = [S] + [c for c in (2048, 1024, 512, 256, 128, 64, 32, 16, 8)
                       if c < S and S % c == 0]
        block_q = cands[-1]
        for c in cands:
            if _vmem_bytes_estimate(S, E, num_heads, c,
                                    compute_bytes, attn_bytes) <= vmem_budget_bytes:
                block_q = c
                break
    assert S % block_q == 0 and (block_q == S or block_q % 8 == 0), (
        "block_q must divide seq_len and be sublane (8) aligned")
    num_q_blocks = S // block_q

    if vmem_limit_bytes is None:
        est = _vmem_bytes_estimate(S, E, num_heads, block_q,
                                   compute_bytes, attn_bytes)
        vmem_limit_bytes = int(min(max(est * 5 // 4, 32 * 1024 * 1024),
                                   128 * 1024 * 1024))

    # ---- one-time wrapper-side layout plumbing -----------------------------
    # PyTorch Linear computes y = x @ W^T + b; pre-transpose so the kernel
    # does plain x @ W.  Fold the 1/sqrt(D) softmax scale into Wq and bq.
    scale = 1.0 / math.sqrt(D)
    wq = (params["wq"].T * scale).astype(compute_dtype)           # (E, E)
    bq = (params["bq"] * scale).reshape(1, E).astype(jnp.float32)
    wk = params["wk"].T.astype(compute_dtype)
    bk = params["bk"].reshape(1, E).astype(jnp.float32)
    wv = params["wv"].T.astype(compute_dtype)
    bv = params["bv"].reshape(1, E).astype(jnp.float32)
    wo = params["wo"].T.astype(compute_dtype)                     # (E, E)
    bo = params["bo"].reshape(1, E).astype(jnp.float32)
    x_c = x.astype(compute_dtype)

    kernel = functools.partial(
        _mha_kernel, num_heads=num_heads, head_dim=D, block_q=block_q,
        seq_len=S, compute_dtype=compute_dtype)

    # Advisory cost estimate so XLA can schedule the wrapper-side packing /
    # casts around the kernel.
    flops = int(8 * B * S * E * E + 4 * B * S * S * E)
    transcendentals = int(B * num_heads * S * S)
    bytes_accessed = int(B * S * E * compute_bytes + B * S * E * 4
                         + B * num_heads * S * S * attn_bytes
                         + 4 * E * E * compute_bytes + 4 * E * 4)
    cost = pl.CostEstimate(flops=flops, transcendentals=transcendentals,
                           bytes_accessed=bytes_accessed)

    const2 = lambda b, qi: (0, 0)

    out, attn = pl.pallas_call(
        kernel,
        out_shape=(
            jax.ShapeDtypeStruct((B, S, E), jnp.float32),
            jax.ShapeDtypeStruct((B, num_heads, S, S), attn_dtype),
        ),
        grid_spec=pltpu.PrefetchScalarGridSpec(
            num_scalar_prefetch=0,
            grid=(B, num_q_blocks),
            in_specs=[
                pl.BlockSpec((1, S, E), lambda b, qi: (b, 0, 0)),  # x (per batch)
                pl.BlockSpec((E, E), const2),                      # Wq (scaled, resident)
                pl.BlockSpec((1, E), const2),                      # bq (scaled)
                pl.BlockSpec((E, E), const2),                      # Wk
                pl.BlockSpec((1, E), const2),                      # bk
                pl.BlockSpec((E, E), const2),                      # Wv
                pl.BlockSpec((1, E), const2),                      # bv
                pl.BlockSpec((E, E), const2),                      # Wo
                pl.BlockSpec((1, E), const2),                      # bo
            ],
            out_specs=[
                pl.BlockSpec((1, block_q, E), lambda b, qi: (b, qi, 0)),            # output
                pl.BlockSpec((1, num_heads, block_q, S), lambda b, qi: (b, 0, qi, 0)),  # attn
            ],
            scratch_shapes=[
                pltpu.VMEM((S, E), compute_dtype),        # K, all heads, full seq
                pltpu.VMEM((S, E), compute_dtype),        # V, all heads, full seq
                pltpu.VMEM((block_q, E), compute_dtype),  # per-q-block context
            ],
        ),
        compiler_params=pltpu.CompilerParams(
            # q-block axis must be sequential ("arbitrary"): K/V scratch is
            # filled at qi == 0 and reused by later q blocks of the batch.
            dimension_semantics=("parallel", "arbitrary"),
            vmem_limit_bytes=vmem_limit_bytes),
        cost_estimate=cost,
    )(x_c, wq, bq, wk, bk, wv, bv, wo, bo)
    return out, attn


def _reference(x, params, num_heads):
    """Plain-JAX (f32) reference mirroring the PyTorch forward."""
    B, S, E = x.shape
    D = E // num_heads

    def lin(x, w, b):
        return jnp.einsum("bse,oe->bso", x, w) + b

    q = lin(x, params["wq"], params["bq"]).reshape(B, S, num_heads, D).transpose(0, 2, 1, 3)
    k = lin(x, params["wk"], params["bk"]).reshape(B, S, num_heads, D).transpose(0, 2, 1, 3)
    v = lin(x, params["wv"], params["bv"]).reshape(B, S, num_heads, D).transpose(0, 2, 1, 3)
    scores = jnp.einsum("bhqd,bhkd->bhqk", q, k) / math.sqrt(D)
    attn = jax.nn.softmax(scores, axis=-1)
    ctx = jnp.einsum("bhqk,bhkd->bhqd", attn, v).transpose(0, 2, 1, 3).reshape(B, S, E)
    out = jnp.einsum("bse,oe->bso", ctx, params["wo"]) + params["bo"]
    return out, attn


def _make_params(key, E):
    keys = jax.random.split(key, 8)
    scale = 1.0 / math.sqrt(E)
    return {
        "wq": jax.random.uniform(keys[0], (E, E), jnp.float32, -scale, scale),
        "bq": jax.random.uniform(keys[1], (E,),   jnp.float32, -scale, scale),
        "wk": jax.random.uniform(keys[2], (E, E), jnp.float32, -scale, scale),
        "bk": jax.random.uniform(keys[3], (E,),   jnp.float32, -scale, scale),
        "wv": jax.random.uniform(keys[4], (E, E), jnp.float32, -scale, scale),
        "bv": jax.random.uniform(keys[5], (E,),   jnp.float32, -scale, scale),
        "wo": jax.random.uniform(keys[6], (E, E), jnp.float32, -scale, scale),
        "bo": jax.random.uniform(keys[7], (E,),   jnp.float32, -scale, scale),
    }


if __name__ == "__main__":
    B, S, E, H = 2, 8, 32, 4      # batch, seq, embed_dim, num_heads

    key = jax.random.PRNGKey(0)
    kp, kx1, kx2 = jax.random.split(key, 3)
    params = _make_params(kp, E)
    x = jax.random.normal(kx1, (B, S, E), jnp.float32)

    ref_out, ref_attn = _reference(x, params, H)

    # 1) float32 MXU-operand path — tight correctness check.
    out32, attn32 = multi_head_attention(x, params, H, compute_dtype=jnp.float32)
    out32, attn32 = jax.block_until_ready((out32, attn32))
    assert jnp.allclose(out32, ref_out, atol=2e-2, rtol=2e-2)
    assert jnp.allclose(attn32, ref_attn, atol=5e-3, rtol=5e-3)

    # 2) default bfloat16 MXU-operand path (f32 accumulation) — looser check.
    outbf, attnbf = multi_head_attention(x, params, H)   # compute_dtype=bf16
    outbf, attnbf = jax.block_until_ready((outbf, attnbf))
    assert jnp.allclose(outbf, ref_out, atol=1e-1, rtol=1e-1)
    assert jnp.allclose(attnbf.astype(jnp.float32), ref_attn, atol=3e-2, rtol=3e-2)

    # 3) query-block-tiled path (K/V cached in VMEM across q blocks), f32 ops.
    S2 = 16
    x2 = jax.random.normal(kx2, (B, S2, E), jnp.float32)
    ref_out2, ref_attn2 = _reference(x2, params, H)
    out_t, attn_t = multi_head_attention(x2, params, H, block_q=8,
                                         compute_dtype=jnp.float32)
    out_t, attn_t = jax.block_until_ready((out_t, attn_t))
    assert jnp.allclose(out_t, ref_out2, atol=2e-2, rtol=2e-2)
    assert jnp.allclose(attn_t, ref_attn2, atol=5e-3, rtol=5e-3)

    print("KERNEL_OK")
</pallas_src>

<mosaic_0001>
module attributes {stable_mosaic.version = 11 : i64} {
  func.func @_mha_kernel(%arg0: i32, %arg1: i32, %arg2: memref<1x8x32xf32, #tpu.memory_space<vmem>>, %arg3: memref<32x32xf32, #tpu.memory_space<vmem>>, %arg4: memref<1x32xf32, #tpu.memory_space<vmem>>, %arg5: memref<32x32xf32, #tpu.memory_space<vmem>>, %arg6: memref<1x32xf32, #tpu.memory_space<vmem>>, %arg7: memref<32x32xf32, #tpu.memory_space<vmem>>, %arg8: memref<1x32xf32, #tpu.memory_space<vmem>>, %arg9: memref<32x32xf32, #tpu.memory_space<vmem>>, %arg10: memref<1x32xf32, #tpu.memory_space<vmem>>, %arg11: memref<1x8x32xf32, #tpu.memory_space<vmem>>, %arg12: memref<1x4x8x8xf32, #tpu.memory_space<vmem>>, %arg13: memref<8x32xf32, #tpu.memory_space<vmem>>, %arg14: memref<8x32xf32, #tpu.memory_space<vmem>>, %arg15: memref<8x32xf32, #tpu.memory_space<vmem>>) attributes {dimension_semantics = [#tpu.dimension_semantics<parallel>, #tpu.dimension_semantics<arbitrary>], iteration_bounds = array<i64: 2, 1>, scalar_prefetch = 0 : i64, scratch_operands = 3 : i64, tpu.core_type = #tpu.core_type<tc>, window_params = [{transform_indices = @transform_0, window_bounds = array<i64: 1, 8, 32>}, {pipeline_mode = #tpu.pipeline_mode<synchronous>, transform_indices = @transform_1, window_bounds = array<i64: 32, 32>}, {pipeline_mode = #tpu.pipeline_mode<synchronous>, transform_indices = @transform_2, window_bounds = array<i64: 1, 32>}, {pipeline_mode = #tpu.pipeline_mode<synchronous>, transform_indices = @transform_3, window_bounds = array<i64: 32, 32>}, {pipeline_mode = #tpu.pipeline_mode<synchronous>, transform_indices = @transform_4, window_bounds = array<i64: 1, 32>}, {pipeline_mode = #tpu.pipeline_mode<synchronous>, transform_indices = @transform_5, window_bounds = array<i64: 32, 32>}, {pipeline_mode = #tpu.pipeline_mode<synchronous>, transform_indices = @transform_6, window_bounds = array<i64: 1, 32>}, {pipeline_mode = #tpu.pipeline_mode<synchronous>, transform_indices = @transform_7, window_bounds = array<i64: 32, 32>}, {pipeline_mode = #tpu.pipeline_mode<synchronous>, transform_indices = @transform_8, window_bounds = array<i64: 1, 32>}, {transform_indices = @transform_9, window_bounds = array<i64: 1, 8, 32>}, {transform_indices = @transform_10, window_bounds = array<i64: 1, 4, 8, 8>}]} {
    %c0_i32 = arith.constant 0 : i32
    %0 = arith.cmpi eq, %arg1, %c0_i32 : i32
    %1 = arith.extui %0 : i1 to i32
    %c0_i32_0 = arith.constant 0 : i32
    %2 = arith.cmpi ne, %1, %c0_i32_0 : i32
    scf.if %2 {
      %c0_67 = arith.constant 0 : index
      %c0_68 = arith.constant 0 : index
      %c0_69 = arith.constant 0 : index
      %91 = vector.load %arg2[%c0_67, %c0_68, %c0_69] : memref<1x8x32xf32, #tpu.memory_space<vmem>>, vector<1x8x32xf32>
      %92 = vector.shape_cast %91 : vector<1x8x32xf32> to vector<8x32xf32>
      %c0_70 = arith.constant 0 : index
      %c0_71 = arith.constant 0 : index
      %93 = vector.load %arg5[%c0_70, %c0_71] : memref<32x32xf32, #tpu.memory_space<vmem>>, vector<32x32xf32>
      %cst_72 = arith.constant dense<0.000000e+00> : vector<8x32xf32>
      %94 = tpu.matmul %92, %93, %cst_72 {dimension_numbers = #tpu.dot_dimension_numbers<[1], [0], [0], [1], [0, 0, 1, 1], [], []>} : vector<8x32xf32>, vector<32x32xf32>, vector<8x32xf32> -> vector<8x32xf32>
      %c0_73 = arith.constant 0 : index
      %c0_74 = arith.constant 0 : index
      %95 = vector.load %arg6[%c0_73, %c0_74] : memref<1x32xf32, #tpu.memory_space<vmem>>, vector<1x32xf32>
      %96 = vector.broadcast %95 : vector<1x32xf32> to vector<8x32xf32>
      %97 = arith.addf %94, %96 : vector<8x32xf32>
      %c0_75 = arith.constant 0 : index
      %c0_76 = arith.constant 0 : index
      %98 = vector.load %arg13[%c0_75, %c0_76] : memref<8x32xf32, #tpu.memory_space<vmem>>, vector<8x32xf32>
      tpu.vector_store %arg13[%c0_75, %c0_76], %97 {strides = array<i32>} : memref<8x32xf32, #tpu.memory_space<vmem>>, vector<8x32xf32>,
      %c0_77 = arith.constant 0 : index
      %c0_78 = arith.constant 0 : index
      %99 = vector.load %arg7[%c0_77, %c0_78] : memref<32x32xf32, #tpu.memory_space<vmem>>, vector<32x32xf32>
      %cst_79 = arith.constant dense<0.000000e+00> : vector<8x32xf32>
      %100 = tpu.matmul %92, %99, %cst_79 {dimension_numbers = #tpu.dot_dimension_numbers<[1], [0], [0], [1], [0, 0, 1, 1], [], []>} : vector<8x32xf32>, vector<32x32xf32>, vector<8x32xf32> -> vector<8x32xf32>
      %c0_80 = arith.constant 0 : index
      %c0_81 = arith.constant 0 : index
      %101 = vector.load %arg8[%c0_80, %c0_81] : memref<1x32xf32, #tpu.memory_space<vmem>>, vector<1x32xf32>
      %102 = vector.broadcast %101 : vector<1x32xf32> to vector<8x32xf32>
      %103 = arith.addf %100, %102 : vector<8x32xf32>
      %c0_82 = arith.constant 0 : index
      %c0_83 = arith.constant 0 : index
      %104 = vector.load %arg14[%c0_82, %c0_83] : memref<8x32xf32, #tpu.memory_space<vmem>>, vector<8x32xf32>
      tpu.vector_store %arg14[%c0_82, %c0_83], %103 {strides = array<i32>} : memref<8x32xf32, #tpu.memory_space<vmem>>, vector<8x32xf32>,
    } else {
    }
    %c0 = arith.constant 0 : index
    %c0_1 = arith.constant 0 : index
    %c0_2 = arith.constant 0 : index
    %3 = vector.load %arg2[%c0, %c0_1, %c0_2] : memref<1x8x32xf32, #tpu.memory_space<vmem>>, vector<1x8x32xf32>
    %4 = vector.shape_cast %3 : vector<1x8x32xf32> to vector<8x32xf32>
    %c0_3 = arith.constant 0 : index
    %c0_4 = arith.constant 0 : index
    %5 = vector.load %arg3[%c0_3, %c0_4] : memref<32x32xf32, #tpu.memory_space<vmem>>, vector<32x32xf32>
    %cst = arith.constant dense<0.000000e+00> : vector<8x32xf32>
    %6 = tpu.matmul %4, %5, %cst {dimension_numbers = #tpu.dot_dimension_numbers<[1], [0], [0], [1], [0, 0, 1, 1], [], []>} : vector<8x32xf32>, vector<32x32xf32>, vector<8x32xf32> -> vector<8x32xf32>
    %c0_5 = arith.constant 0 : index
    %c0_6 = arith.constant 0 : index
    %7 = vector.load %arg4[%c0_5, %c0_6] : memref<1x32xf32, #tpu.memory_space<vmem>>, vector<1x32xf32>
    %8 = vector.broadcast %7 : vector<1x32xf32> to vector<8x32xf32>
    %9 = arith.addf %6, %8 : vector<8x32xf32>
    %10 = vector.extract_strided_slice %9 {offsets = [0, 0], sizes = [8, 8], strides = [1, 1]} : vector<8x32xf32> to vector<8x8xf32>
    %c0_7 = arith.constant 0 : index
    %c0_8 = arith.constant 0 : index
    %11 = vector.load %arg13[%c0_7, %c0_8] : memref<8x32xf32, #tpu.memory_space<vmem>>, vector<8x8xf32>
    %c0_9 = arith.constant 0 : index
    %c0_10 = arith.constant 0 : index
    %12 = vector.load %arg14[%c0_9, %c0_10] : memref<8x32xf32, #tpu.memory_space<vmem>>, vector<8x8xf32>
    %cst_11 = arith.constant dense<0.000000e+00> : vector<8x8xf32>
    %13 = tpu.matmul %10, %11, %cst_11 {dimension_numbers = #tpu.dot_dimension_numbers<[1], [1], [0], [0], [0, 0, 1, 0], [], []>} : vector<8x8xf32>, vector<8x8xf32>, vector<8x8xf32> -> vector<8x8xf32>
    %cst_12 = arith.constant dense<0xFF800000> : vector<8xf32>
    %14 = vector.multi_reduction <maximumf>, %13, %cst_12 [1] : vector<8x8xf32> to vector<8xf32>
    %15 = vector.shape_cast %14 : vector<8xf32> to vector<8x1xf32>
    %16 = vector.broadcast %15 : vector<8x1xf32> to vector<8x8xf32>
    %17 = arith.subf %13, %16 : vector<8x8xf32>
    %18 = math.exp %17 : vector<8x8xf32>
    %cst_13 = arith.constant dense<0.000000e+00> : vector<8xf32>
    %19 = vector.multi_reduction <add>, %18, %cst_13 [1] : vector<8x8xf32> to vector<8xf32>
    %20 = vector.shape_cast %19 : vector<8xf32> to vector<8x1xf32>
    %21 = vector.broadcast %20 : vector<8x1xf32> to vector<8x8xf32>
    %22 = arith.divf %18, %21 : vector<8x8xf32>
    %c0_14 = arith.constant 0 : index
    %c0_15 = arith.constant 0 : index
    %c0_16 = arith.constant 0 : index
    %c0_17 = arith.constant 0 : index
    %23 = vector.load %arg12[%c0_14, %c0_15, %c0_16, %c0_17] : memref<1x4x8x8xf32, #tpu.memory_space<vmem>>, vector<1x1x8x8xf32>
    %24 = vector.shape_cast %23 : vector<1x1x8x8xf32> to vector<8x8xf32>
    %25 = vector.shape_cast %22 : vector<8x8xf32> to vector<1x1x8x8xf32>
    tpu.vector_store %arg12[%c0_14, %c0_15, %c0_16, %c0_17], %25 {strides = array<i32>} : memref<1x4x8x8xf32, #tpu.memory_space<vmem>>, vector<1x1x8x8xf32>,
    %cst_18 = arith.constant dense<0.000000e+00> : vector<8x8xf32>
    %26 = tpu.matmul %22, %12, %cst_18 {dimension_numbers = #tpu.dot_dimension_numbers<[1], [0], [0], [1], [0, 0, 1, 1], [], []>} : vector<8x8xf32>, vector<8x8xf32>, vector<8x8xf32> -> vector<8x8xf32>
    %c0_19 = arith.constant 0 : index
    %c0_20 = arith.constant 0 : index
    %27 = vector.load %arg15[%c0_19, %c0_20] : memref<8x32xf32, #tpu.memory_space<vmem>>, vector<8x8xf32>
    tpu.vector_store %arg15[%c0_19, %c0_20], %26 {strides = array<i32>} : memref<8x32xf32, #tpu.memory_space<vmem>>, vector<8x8xf32>,
    %28 = vector.extract_strided_slice %9 {offsets = [0, 8], sizes = [8, 8], strides = [1, 1]} : vector<8x32xf32> to vector<8x8xf32>
    %c0_21 = arith.constant 0 : index
    %c8 = arith.constant 8 : index
    %29 = vector.load %arg13[%c0_21, %c8] : memref<8x32xf32, #tpu.memory_space<vmem>>, vector<8x8xf32>
    %c0_22 = arith.constant 0 : index
    %c8_23 = arith.constant 8 : index
    %30 = vector.load %arg14[%c0_22, %c8_23] : memref<8x32xf32, #tpu.memory_space<vmem>>, vector<8x8xf32>
    %cst_24 = arith.constant dense<0.000000e+00> : vector<8x8xf32>
    %31 = tpu.matmul %28, %29, %cst_24 {dimension_numbers = #tpu.dot_dimension_numbers<[1], [1], [0], [0], [0, 0, 1, 0], [], []>} : vector<8x8xf32>, vector<8x8xf32>, vector<8x8xf32> -> vector<8x8xf32>
    %cst_25 = arith.constant dense<0xFF800000> : vector<8xf32>
    %32 = vector.multi_reduction <maximumf>, %31, %cst_25 [1] : vector<8x8xf32> to vector<8xf32>
    %33 = vector.shape_cast %32 : vector<8xf32> to vector<8x1xf32>
    %34 = vector.broadcast %33 : vector<8x1xf32> to vector<8x8xf32>
    %35 = arith.subf %31, %34 : vector<8x8xf32>
    %36 = math.exp %35 : vector<8x8xf32>
    %cst_26 = arith.constant dense<0.000000e+00> : vector<8xf32>
    %37 = vector.multi_reduction <add>, %36, %cst_26 [1] : vector<8x8xf32> to vector<8xf32>
    %38 = vector.shape_cast %37 : vector<8xf32> to vector<8x1xf32>
    %39 = vector.broadcast %38 : vector<8x1xf32> to vector<8x8xf32>
    %40 = arith.divf %36, %39 : vector<8x8xf32>
    %c0_27 = arith.constant 0 : index
    %c1 = arith.constant 1 : index
    %c0_28 = arith.constant 0 : index
    %c0_29 = arith.constant 0 : index
    %41 = vector.load %arg12[%c0_27, %c1, %c0_28, %c0_29] : memref<1x4x8x8xf32, #tpu.memory_space<vmem>>, vector<1x1x8x8xf32>
    %42 = vector.shape_cast %41 : vector<1x1x8x8xf32> to vector<8x8xf32>
    %43 = vector.shape_cast %40 : vector<8x8xf32> to vector<1x1x8x8xf32>
    tpu.vector_store %arg12[%c0_27, %c1, %c0_28, %c0_29], %43 {strides = array<i32>} : memref<1x4x8x8xf32, #tpu.memory_space<vmem>>, vector<1x1x8x8xf32>,
    %cst_30 = arith.constant dense<0.000000e+00> : vector<8x8xf32>
    %44 = tpu.matmul %40, %30, %cst_30 {dimension_numbers = #tpu.dot_dimension_numbers<[1], [0], [0], [1], [0, 0, 1, 1], [], []>} : vector<8x8xf32>, vector<8x8xf32>, vector<8x8xf32> -> vector<8x8xf32>
    %c0_31 = arith.constant 0 : index
    %c8_32 = arith.constant 8 : index
    %45 = vector.load %arg15[%c0_31, %c8_32] : memref<8x32xf32, #tpu.memory_space<vmem>>, vector<8x8xf32>
    tpu.vector_store %arg15[%c0_31, %c8_32], %44 {strides = array<i32>} : memref<8x32xf32, #tpu.memory_space<vmem>>, vector<8x8xf32>,
    %46 = vector.extract_strided_slice %9 {offsets = [0, 16], sizes = [8, 8], strides = [1, 1]} : vector<8x32xf32> to vector<8x8xf32>
    %c0_33 = arith.constant 0 : index
    %c16 = arith.constant 16 : index
    %47 = vector.load %arg13[%c0_33, %c16] : memref<8x32xf32, #tpu.memory_space<vmem>>, vector<8x8xf32>
    %c0_34 = arith.constant 0 : index
    %c16_35 = arith.constant 16 : index
    %48 = vector.load %arg14[%c0_34, %c16_35] : memref<8x32xf32, #tpu.memory_space<vmem>>, vector<8x8xf32>
    %cst_36 = arith.constant dense<0.000000e+00> : vector<8x8xf32>
    %49 = tpu.matmul %46, %47, %cst_36 {dimension_numbers = #tpu.dot_dimension_numbers<[1], [1], [0], [0], [0, 0, 1, 0], [], []>} : vector<8x8xf32>, vector<8x8xf32>, vector<8x8xf32> -> vector<8x8xf32>
    %cst_37 = arith.constant dense<0xFF800000> : vector<8xf32>
    %50 = vector.multi_reduction <maximumf>, %49, %cst_37 [1] : vector<8x8xf32> to vector<8xf32>
    %51 = vector.shape_cast %50 : vector<8xf32> to vector<8x1xf32>
    %52 = vector.broadcast %51 : vector<8x1xf32> to vector<8x8xf32>
    %53 = arith.subf %49, %52 : vector<8x8xf32>
    %54 = math.exp %53 : vector<8x8xf32>
    %cst_38 = arith.constant dense<0.000000e+00> : vector<8xf32>
    %55 = vector.multi_reduction <add>, %54, %cst_38 [1] : vector<8x8xf32> to vector<8xf32>
    %56 = vector.shape_cast %55 : vector<8xf32> to vector<8x1xf32>
    %57 = vector.broadcast %56 : vector<8x1xf32> to vector<8x8xf32>
    %58 = arith.divf %54, %57 : vector<8x8xf32>
    %c0_39 = arith.constant 0 : index
    %c2 = arith.constant 2 : index
    %c0_40 = arith.constant 0 : index
    %c0_41 = arith.constant 0 : index
    %59 = vector.load %arg12[%c0_39, %c2, %c0_40, %c0_41] : memref<1x4x8x8xf32, #tpu.memory_space<vmem>>, vector<1x1x8x8xf32>
    %60 = vector.shape_cast %59 : vector<1x1x8x8xf32> to vector<8x8xf32>
    %61 = vector.shape_cast %58 : vector<8x8xf32> to vector<1x1x8x8xf32>
    tpu.vector_store %arg12[%c0_39, %c2, %c0_40, %c0_41], %61 {strides = array<i32>} : memref<1x4x8x8xf32, #tpu.memory_space<vmem>>, vector<1x1x8x8xf32>,
    %cst_42 = arith.constant dense<0.000000e+00> : vector<8x8xf32>
    %62 = tpu.matmul %58, %48, %cst_42 {dimension_numbers = #tpu.dot_dimension_numbers<[1], [0], [0], [1], [0, 0, 1, 1], [], []>} : vector<8x8xf32>, vector<8x8xf32>, vector<8x8xf32> -> vector<8x8xf32>
    %c0_43 = arith.constant 0 : index
    %c16_44 = arith.constant 16 : index
    %63 = vector.load %arg15[%c0_43, %c16_44] : memref<8x32xf32, #tpu.memory_space<vmem>>, vector<8x8xf32>
    tpu.vector_store %arg15[%c0_43, %c16_44], %62 {strides = array<i32>} : memref<8x32xf32, #tpu.memory_space<vmem>>, vector<8x8xf32>,
    %64 = vector.extract_strided_slice %9 {offsets = [0, 24], sizes = [8, 8], strides = [1, 1]} : vector<8x32xf32> to vector<8x8xf32>
    %c0_45 = arith.constant 0 : index
    %c24 = arith.constant 24 : index
    %65 = vector.load %arg13[%c0_45, %c24] : memref<8x32xf32, #tpu.memory_space<vmem>>, vector<8x8xf32>
    %c0_46 = arith.constant 0 : index
    %c24_47 = arith.constant 24 : index
    %66 = vector.load %arg14[%c0_46, %c24_47] : memref<8x32xf32, #tpu.memory_space<vmem>>, vector<8x8xf32>
    %cst_48 = arith.constant dense<0.000000e+00> : vector<8x8xf32>
    %67 = tpu.matmul %64, %65, %cst_48 {dimension_numbers = #tpu.dot_dimension_numbers<[1], [1], [0], [0], [0, 0, 1, 0], [], []>} : vector<8x8xf32>, vector<8x8xf32>, vector<8x8xf32> -> vector<8x8xf32>
    %cst_49 = arith.constant dense<0xFF800000> : vector<8xf32>
    %68 = vector.multi_reduction <maximumf>, %67, %cst_49 [1] : vector<8x8xf32> to vector<8xf32>
    %69 = vector.shape_cast %68 : vector<8xf32> to vector<8x1xf32>
    %70 = vector.broadcast %69 : vector<8x1xf32> to vector<8x8xf32>
    %71 = arith.subf %67, %70 : vector<8x8xf32>
    %72 = math.exp %71 : vector<8x8xf32>
    %cst_50 = arith.constant dense<0.000000e+00> : vector<8xf32>
    %73 = vector.multi_reduction <add>, %72, %cst_50 [1] : vector<8x8xf32> to vector<8xf32>
    %74 = vector.shape_cast %73 : vector<8xf32> to vector<8x1xf32>
    %75 = vector.broadcast %74 : vector<8x1xf32> to vector<8x8xf32>
    %76 = arith.divf %72, %75 : vector<8x8xf32>
    %c0_51 = arith.constant 0 : index
    %c3 = arith.constant 3 : index
    %c0_52 = arith.constant 0 : index
    %c0_53 = arith.constant 0 : index
    %77 = vector.load %arg12[%c0_51, %c3, %c0_52, %c0_53] : memref<1x4x8x8xf32, #tpu.memory_space<vmem>>, vector<1x1x8x8xf32>
    %78 = vector.shape_cast %77 : vector<1x1x8x8xf32> to vector<8x8xf32>
    %79 = vector.shape_cast %76 : vector<8x8xf32> to vector<1x1x8x8xf32>
    tpu.vector_store %arg12[%c0_51, %c3, %c0_52, %c0_53], %79 {strides = array<i32>} : memref<1x4x8x8xf32, #tpu.memory_space<vmem>>, vector<1x1x8x8xf32>,
    %cst_54 = arith.constant dense<0.000000e+00> : vector<8x8xf32>
    %80 = tpu.matmul %76, %66, %cst_54 {dimension_numbers = #tpu.dot_dimension_numbers<[1], [0], [0], [1], [0, 0, 1, 1], [], []>} : vector<8x8xf32>, vector<8x8xf32>, vector<8x8xf32> -> vector<8x8xf32>
    %c0_55 = arith.constant 0 : index
    %c24_56 = arith.constant 24 : index
    %81 = vector.load %arg15[%c0_55, %c24_56] : memref<8x32xf32, #tpu.memory_space<vmem>>, vector<8x8xf32>
    tpu.vector_store %arg15[%c0_55, %c24_56], %80 {strides = array<i32>} : memref<8x32xf32, #tpu.memory_space<vmem>>, vector<8x8xf32>,
    %c0_57 = arith.constant 0 : index
    %c0_58 = arith.constant 0 : index
    %82 = vector.load %arg15[%c0_57, %c0_58] : memref<8x32xf32, #tpu.memory_space<vmem>>, vector<8x32xf32>
    %c0_59 = arith.constant 0 : index
    %c0_60 = arith.constant 0 : index
    %83 = vector.load %arg9[%c0_59, %c0_60] : memref<32x32xf32, #tpu.memory_space<vmem>>, vector<32x32xf32>
    %cst_61 = arith.constant dense<0.000000e+00> : vector<8x32xf32>
    %84 = tpu.matmul %82, %83, %cst_61 {dimension_numbers = #tpu.dot_dimension_numbers<[1], [0], [0], [1], [0, 0, 1, 1], [], []>} : vector<8x32xf32>, vector<32x32xf32>, vector<8x32xf32> -> vector<8x32xf32>
    %c0_62 = arith.constant 0 : index
    %c0_63 = arith.constant 0 : index
    %85 = vector.load %arg10[%c0_62, %c0_63] : memref<1x32xf32, #tpu.memory_space<vmem>>, vector<1x32xf32>
    %86 = vector.broadcast %85 : vector<1x32xf32> to vector<8x32xf32>
    %87 = arith.addf %84, %86 : vector<8x32xf32>
    %c0_64 = arith.constant 0 : index
    %c0_65 = arith.constant 0 : index
    %c0_66 = arith.constant 0 : index
    %88 = vector.load %arg11[%c0_64, %c0_65, %c0_66] : memref<1x8x32xf32, #tpu.memory_space<vmem>>, vector<1x8x32xf32>
    %89 = vector.shape_cast %88 : vector<1x8x32xf32> to vector<8x32xf32>
    %90 = vector.shape_cast %87 : vector<8x32xf32> to vector<1x8x32xf32>
    tpu.vector_store %arg11[%c0_64, %c0_65, %c0_66], %90 {strides = array<i32>} : memref<1x8x32xf32, #tpu.memory_space<vmem>>, vector<1x8x32xf32>,
    return
  }
  func.func @transform_0(%arg0: i32, %arg1: i32) -> (i32, i32, i32) {
    %c0_i32 = arith.constant 0 : i32
    %c0_i32_0 = arith.constant 0 : i32
    %c0_i32_1 = arith.constant 0 : i32
    return %arg0, %c0_i32, %c0_i32_0 : i32, i32, i32
  }
  func.func @transform_1(%arg0: i32, %arg1: i32) -> (i32, i32) {
    %c0_i32 = arith.constant 0 : i32
    %c0_i32_0 = arith.constant 0 : i32
    %c0_i32_1 = arith.constant 0 : i32
    return %c0_i32, %c0_i32_0 : i32, i32
  }
  func.func @transform_2(%arg0: i32, %arg1: i32) -> (i32, i32) {
    %c0_i32 = arith.constant 0 : i32
    %c0_i32_0 = arith.constant 0 : i32
    %c0_i32_1 = arith.constant 0 : i32
    return %c0_i32, %c0_i32_0 : i32, i32
  }
  func.func @transform_3(%arg0: i32, %arg1: i32) -> (i32, i32) {
    %c0_i32 = arith.constant 0 : i32
    %c0_i32_0 = arith.constant 0 : i32
    %c0_i32_1 = arith.constant 0 : i32
    return %c0_i32, %c0_i32_0 : i32, i32
  }
  func.func @transform_4(%arg0: i32, %arg1: i32) -> (i32, i32) {
    %c0_i32 = arith.constant 0 : i32
    %c0_i32_0 = arith.constant 0 : i32
    %c0_i32_1 = arith.constant 0 : i32
    return %c0_i32, %c0_i32_0 : i32, i32
  }
  func.func @transform_5(%arg0: i32, %arg1: i32) -> (i32, i32) {
    %c0_i32 = arith.constant 0 : i32
    %c0_i32_0 = arith.constant 0 : i32
    %c0_i32_1 = arith.constant 0 : i32
    return %c0_i32, %c0_i32_0 : i32, i32
  }
  func.func @transform_6(%arg0: i32, %arg1: i32) -> (i32, i32) {
    %c0_i32 = arith.constant 0 : i32
    %c0_i32_0 = arith.constant 0 : i32
    %c0_i32_1 = arith.constant 0 : i32
    return %c0_i32, %c0_i32_0 : i32, i32
  }
  func.func @transform_7(%arg0: i32, %arg1: i32) -> (i32, i32) {
    %c0_i32 = arith.constant 0 : i32
    %c0_i32_0 = arith.constant 0 : i32
    %c0_i32_1 = arith.constant 0 : i32
    return %c0_i32, %c0_i32_0 : i32, i32
  }
  func.func @transform_8(%arg0: i32, %arg1: i32) -> (i32, i32) {
    %c0_i32 = arith.constant 0 : i32
    %c0_i32_0 = arith.constant 0 : i32
    %c0_i32_1 = arith.constant 0 : i32
    return %c0_i32, %c0_i32_0 : i32, i32
  }
  func.func @transform_9(%arg0: i32, %arg1: i32) -> (i32, i32, i32) {
    %c0_i32 = arith.constant 0 : i32
    %c0_i32_0 = arith.constant 0 : i32
    return %arg0, %arg1, %c0_i32 : i32, i32, i32
  }
  func.func @transform_10(%arg0: i32, %arg1: i32) -> (i32, i32, i32, i32) {
    %c0_i32 = arith.constant 0 : i32
    %c0_i32_0 = arith.constant 0 : i32
    %c0_i32_1 = arith.constant 0 : i32
    return %arg0, %c0_i32, %arg1, %c0_i32_0 : i32, i32, i32, i32
  }
}

</mosaic_0001>

<llo_original>
// kernel: tpu_custom_call.1
$region0: #{tpu_custom_call.1}
  #allocation0 [shape = 'u32[]', space=smem, size = 0x4, offset = 0x4, fixed_abs, tag = 'smem constant byte address 0x4 - core index']
  #allocation1 [shape = 'u32[144,128]{1,0:T(1,128)}', space=vmem, size = 0x12000, scoped, tag = 'internal scratch']
  #allocation2 [shape = 'f32[8,32]{1,0:T(8,128)}', space=vmem, size = 0x1000, scoped, tag = 'scratch operand']
  #allocation3 [shape = 'f32[8,32]{1,0:T(8,128)}', space=vmem, size = 0x1000, scoped, tag = 'scratch operand']
  #allocation4 [shape = 'f32[8,32]{1,0:T(8,128)}', space=vmem, size = 0x1000, scoped, tag = 'scratch operand']
  %s0 = inlined_call_operand.hbm [shape: f32[2,8,32], index: 0, kind: input, shape index: {}]
  %s1 = inlined_call_operand.hbm [shape: f32[32,32], index: 1, kind: input, shape index: {}]
  %s2 = inlined_call_operand.vmem [shape: f32[1,32], index: 2, kind: input, shape index: {}]
  %s3 = inlined_call_operand.hbm [shape: f32[32,32], index: 3, kind: input, shape index: {}]
  %s4 = inlined_call_operand.vmem [shape: f32[1,32], index: 4, kind: input, shape index: {}]
  %s5 = inlined_call_operand.hbm [shape: f32[32,32], index: 5, kind: input, shape index: {}]
  %s6 = inlined_call_operand.vmem [shape: f32[1,32], index: 6, kind: input, shape index: {}]
  %s7 = inlined_call_operand.hbm [shape: f32[32,32], index: 7, kind: input, shape index: {}]
  %s8 = inlined_call_operand.vmem [shape: f32[1,32], index: 8, kind: input, shape index: {}]
  %s9 = inlined_call_operand.hbm [shape: f32[2,8,32], index: 9, kind: output, shape index: {0}]
  %s10 = inlined_call_operand.hbm [shape: f32[2,4,8,8], index: 10, kind: output, shape index: {1}]
  %11 = xla_tuple %s9, %s10
  %s12 = sld [smem:[#allocation0]]
  $region101: #{tpu_custom_call.1} parent=0
    _
  %s14 = ssub.s32 1, %s12
  %s15 = scalar_select 0, %s14, %s12
  $region1: #{tpu_custom_call.1} parent=0
    #allocation5 [shape = 'u8[8192]{0}', space=vmem, size = 0x2000, scoped, tag = 'input window, operand 0']
    #allocation6 [shape = 's32[2]{0}', space=sflag, size = 0x8, scoped, tag = 'scoped memory for tpu_custom_call.1']
    #allocation7 [shape = 's32[2]{0}', space=sflag, size = 0x8, scoped, tag = 'scoped memory for tpu_custom_call.1']
    #allocation8 [shape = 'u8[16384]{0}', space=vmem, size = 0x4000, scoped, tag = 'input window, operand 1, single buffered']
    #allocation9 [shape = 's32[1]{0}', space=sflag, size = 0x4, scoped, tag = 'scoped memory for tpu_custom_call.1']
    #allocation10 [shape = 'u8[16384]{0}', space=vmem, size = 0x4000, scoped, tag = 'input window, operand 3, single buffered']
    #allocation11 [shape = 'u8[16384]{0}', space=vmem, size = 0x4000, scoped, tag = 'input window, operand 5, single buffered']
    #allocation12 [shape = 's32[1]{0}', space=sflag, size = 0x4, scoped, tag = 'scoped memory for tpu_custom_call.1']
    #allocation13 [shape = 'u8[16384]{0}', space=vmem, size = 0x4000, scoped, tag = 'input window, operand 7, single buffered']
    #allocation14 [shape = 'u8[8192]{0}', space=vmem, size = 0x2000, scoped, tag = 'output window, operand 0']
    #allocation15 [shape = 'u8[32768]{0}', space=vmem, size = 0x8000, scoped, tag = 'output window, operand 1']
    #allocation16 [shape = 's32[2]{0}', space=sflag, size = 0x8, scoped, tag = 'scoped memory for tpu_custom_call.1']
    %16 = vsyncpa [#allocation6], 0
    %s17 = scalar_lea.sflag [#allocation6], 1
    %18 = vsyncpa %s17, 0
    %19 = vsyncpa [#allocation9], 0
    %20 = vsyncpa [#allocation12], 0
    %21 = vsyncpa [#allocation7], 0
    %s22 = scalar_lea.sflag [#allocation7], 1
    %23 = vsyncpa %s22, 0
    %24 = vsyncpa [#allocation16], 0
    %s25 = scalar_lea.sflag [#allocation16], 1
    %26 = vsyncpa %s25, 0
    loop: start=0, step=1, limit=4
    $region2: #{tpu_custom_call.1} parent=1 // loop_pre_header
      _
    $region3: #{tpu_custom_call.1} parent=1 // loop_header
      %s28 = sphi 0, %s32
      %p29 = scmp.ge.s32.totalorder %s28, 4
      %s35 = sphi 0, %s47
      %s36 = sphi 0, %s43
      %s37 = sphi 0, %s35
      %s38 = sphi 0, %s36
      %s39 = sphi 0, %s37
      %s40 = sphi 0, %s38
      %s50 = sphi 0, %s52
      %s53 = sphi 0, %s50
      %s54 = sphi 0, %s53
      %s70 = sphi 0, %s54
      %s74 = sphi 0, %s74
      %s76 = sphi 0, %s74
      %s77 = sphi 0, %s76
      %s91 = sphi 0, %s77
      %s95 = sphi 0, %s95
      %s97 = sphi 0, %s95
      %s98 = sphi 0, %s97
      %s112 = sphi 0, %s98
      %s116 = sphi 0, %s116
      %s118 = sphi 0, %s116
      %s119 = sphi 0, %s118
      %s133 = sphi 0, %s119
      %s137 = sphi 0, %s137
      %s139 = sphi 0, %s137
      %s140 = sphi 0, %s139
      %s154 = sphi 0, %s140
      %s158 = sphi 0, %s158
      %s160 = sphi 0, %s158
      %s161 = sphi 0, %s160
      %s175 = sphi 0, %s161
      %s179 = sphi 0, %s179
      %s181 = sphi 0, %s179
      %s182 = sphi 0, %s181
      %s196 = sphi 0, %s182
      %s200 = sphi 0, %s200
      %s202 = sphi 0, %s200
      %s203 = sphi 0, %s202
      %s217 = sphi 0, %s203
      %s221 = sphi 0, %s221
      %s223 = sphi 0, %s221
      %s224 = sphi 0, %s223
      %s238 = sphi 0, %s224
      %s246 = sphi 0, %s248
      %s249 = sphi 0, %s246
      %s250 = sphi 0, %s249
      %s266 = sphi 0, %s250
      %s274 = sphi 0, %s276
      %s277 = sphi 0, %s274
      %s278 = sphi 0, %s277
      %s294 = sphi 0, %s278
    $region4: #{tpu_custom_call.1} parent=1 // loop_header_branch
      %31 = sbr.rel (%p29) target = $region8
    $region5: #{tpu_custom_call.1} parent=1 // loop_body
      %s33 = ssub.s32 %s28, 1
      %s34 = ssub.s32 %s28, 2
      %s41 = sadd.s32 1, %s36
      %p42 = scmp.ge.s32.totalorder %s41, 1
      %s43 = scalar_select %p42, 0, %s41
      %s44 = sadd.s32 1, %s35
      %s45 = scalar_select %p42, %s44, %s35
      %p46 = scmp.ge.s32.totalorder %s45, 2
      %s47 = scalar_select %p46, 0, %s45
      %s48 = ssub.s32 %s35, %s47
      %p49 = scmp.eq.s32.totalorder %s48, 0
      %s51 = sadd.s32 %s50, 1
      %s52 = scalar_select %p49, %s50, %s51
      %p55 = pneg %p49
      %p56 = scmp.eq.s32.totalorder %s28, 1
      %p57 = por %p55, %p56
      %p58 = scmp.ne.s32.totalorder %s50, %s53
      %p59 = scmp.eq.s32.totalorder %s28, 0
      %p60 = por %p58, %p59
      %p61 = scmp.ne.s32.totalorder %s50, %s53
      %p62 = scmp.eq.s32.totalorder %s33, 1
      %p63 = por %p61, %p62
      %p64 = scmp.ne.s32.totalorder %s53, %s54
      %p65 = scmp.eq.s32.totalorder %s33, 0
      %p66 = por %p64, %p65
      %p67 = scmp.ne.s32.totalorder %s53, %s54
      %p68 = scmp.eq.s32.totalorder %s34, 1
      %p69 = por %p67, %p68
      %p71 = scmp.ne.s32.totalorder %s54, %s70
      %p72 = scmp.eq.s32.totalorder %s34, 0
      %p73 = por %p71, %p72
      %s75 = sadd.s32 %s74, 1
      %p78 = scmp.eq.s32.totalorder %s28, 1
      %p79 = scmp.ne.s32.totalorder %s74, %s76
      %p80 = scmp.eq.s32.totalorder %s28, 0
      %p81 = por %p79, %p80
      %p82 = scmp.ne.s32.totalorder %s74, %s76
      %p83 = scmp.eq.s32.totalorder %s33, 1
      %p84 = por %p82, %p83
      %p85 = scmp.ne.s32.totalorder %s76, %s77
      %p86 = scmp.eq.s32.totalorder %s33, 0
      %p87 = por %p85, %p86
      %p88 = scmp.ne.s32.totalorder %s76, %s77
      %p89 = scmp.eq.s32.totalorder %s34, 1
      %p90 = por %p88, %p89
      %p92 = scmp.ne.s32.totalorder %s77, %s91
      %p93 = scmp.eq.s32.totalorder %s34, 0
      %p94 = por %p92, %p93
      %s96 = sadd.s32 %s95, 1
      %p99 = scmp.eq.s32.totalorder %s28, 1
      %p100 = scmp.ne.s32.totalorder %s95, %s97
      %p101 = scmp.eq.s32.totalorder %s28, 0
      %p102 = por %p100, %p101
      %p103 = scmp.ne.s32.totalorder %s95, %s97
      %p104 = scmp.eq.s32.totalorder %s33, 1
      %p105 = por %p103, %p104
      %p106 = scmp.ne.s32.totalorder %s97, %s98
      %p107 = scmp.eq.s32.totalorder %s33, 0
      %p108 = por %p106, %p107
      %p109 = scmp.ne.s32.totalorder %s97, %s98
      %p110 = scmp.eq.s32.totalorder %s34, 1
      %p111 = por %p109, %p110
      %p113 = scmp.ne.s32.totalorder %s98, %s112
      %p114 = scmp.eq.s32.totalorder %s34, 0
      %p115 = por %p113, %p114
      %s117 = sadd.s32 %s116, 1
      %p120 = scmp.eq.s32.totalorder %s28, 1
      %p121 = scmp.ne.s32.totalorder %s116, %s118
      %p122 = scmp.eq.s32.totalorder %s28, 0
      %p123 = por %p121, %p122
      %p124 = scmp.ne.s32.totalorder %s116, %s118
      %p125 = scmp.eq.s32.totalorder %s33, 1
      %p126 = por %p124, %p125
      %p127 = scmp.ne.s32.totalorder %s118, %s119
      %p128 = scmp.eq.s32.totalorder %s33, 0
      %p129 = por %p127, %p128
      %p130 = scmp.ne.s32.totalorder %s118, %s119
      %p131 = scmp.eq.s32.totalorder %s34, 1
      %p132 = por %p130, %p131
      %p134 = scmp.ne.s32.totalorder %s119, %s133
      %p135 = scmp.eq.s32.totalorder %s34, 0
      %p136 = por %p134, %p135
      %s138 = sadd.s32 %s137, 1
      %p141 = scmp.eq.s32.totalorder %s28, 1
      %p142 = scmp.ne.s32.totalorder %s137, %s139
      %p143 = scmp.eq.s32.totalorder %s28, 0
      %p144 = por %p142, %p143
      %p145 = scmp.ne.s32.totalorder %s137, %s139
      %p146 = scmp.eq.s32.totalorder %s33, 1
      %p147 = por %p145, %p146
      %p148 = scmp.ne.s32.totalorder %s139, %s140
      %p149 = scmp.eq.s32.totalorder %s33, 0
      %p150 = por %p148, %p149
      %p151 = scmp.ne.s32.totalorder %s139, %s140
      %p152 = scmp.eq.s32.totalorder %s34, 1
      %p153 = por %p151, %p152
      %p155 = scmp.ne.s32.totalorder %s140, %s154
      %p156 = scmp.eq.s32.totalorder %s34, 0
      %p157 = por %p155, %p156
      %s159 = sadd.s32 %s158, 1
      %p162 = scmp.eq.s32.totalorder %s28, 1
      %p163 = scmp.ne.s32.totalorder %s158, %s160
      %p164 = scmp.eq.s32.totalorder %s28, 0
      %p165 = por %p163, %p164
      %p166 = scmp.ne.s32.totalorder %s158, %s160
      %p167 = scmp.eq.s32.totalorder %s33, 1
      %p168 = por %p166, %p167
      %p169 = scmp.ne.s32.totalorder %s160, %s161
      %p170 = scmp.eq.s32.totalorder %s33, 0
      %p171 = por %p169, %p170
      %p172 = scmp.ne.s32.totalorder %s160, %s161
      %p173 = scmp.eq.s32.totalorder %s34, 1
      %p174 = por %p172, %p173
      %p176 = scmp.ne.s32.totalorder %s161, %s175
      %p177 = scmp.eq.s32.totalorder %s34, 0
      %p178 = por %p176, %p177
      %s180 = sadd.s32 %s179, 1
      %p183 = scmp.eq.s32.totalorder %s28, 1
      %p184 = scmp.ne.s32.totalorder %s179, %s181
      %p185 = scmp.eq.s32.totalorder %s28, 0
      %p186 = por %p184, %p185
      %p187 = scmp.ne.s32.totalorder %s179, %s181
      %p188 = scmp.eq.s32.totalorder %s33, 1
      %p189 = por %p187, %p188
      %p190 = scmp.ne.s32.totalorder %s181, %s182
      %p191 = scmp.eq.s32.totalorder %s33, 0
      %p192 = por %p190, %p191
      %p193 = scmp.ne.s32.totalorder %s181, %s182
      %p194 = scmp.eq.s32.totalorder %s34, 1
      %p195 = por %p193, %p194
      %p197 = scmp.ne.s32.totalorder %s182, %s196
      %p198 = scmp.eq.s32.totalorder %s34, 0
      %p199 = por %p197, %p198
      %s201 = sadd.s32 %s200, 1
      %p204 = scmp.eq.s32.totalorder %s28, 1
      %p205 = scmp.ne.s32.totalorder %s200, %s202
      %p206 = scmp.eq.s32.totalorder %s28, 0
      %p207 = por %p205, %p206
      %p208 = scmp.ne.s32.totalorder %s200, %s202
      %p209 = scmp.eq.s32.totalorder %s33, 1
      %p210 = por %p208, %p209
      %p211 = scmp.ne.s32.totalorder %s202, %s203
      %p212 = scmp.eq.s32.totalorder %s33, 0
      %p213 = por %p211, %p212
      %p214 = scmp.ne.s32.totalorder %s202, %s203
      %p215 = scmp.eq.s32.totalorder %s34, 1
      %p216 = por %p214, %p215
      %p218 = scmp.ne.s32.totalorder %s203, %s217
      %p219 = scmp.eq.s32.totalorder %s34, 0
      %p220 = por %p218, %p219
      %s222 = sadd.s32 %s221, 1
      %p225 = scmp.eq.s32.totalorder %s28, 1
      %p226 = scmp.ne.s32.totalorder %s221, %s223
      %p227 = scmp.eq.s32.totalorder %s28, 0
      %p228 = por %p226, %p227
      %p229 = scmp.ne.s32.totalorder %s221, %s223
      %p230 = scmp.eq.s32.totalorder %s33, 1
      %p231 = por %p229, %p230
      %p232 = scmp.ne.s32.totalorder %s223, %s224
      %p233 = scmp.eq.s32.totalorder %s33, 0
      %p234 = por %p232, %p233
      %p235 = scmp.ne.s32.totalorder %s223, %s224
      %p236 = scmp.eq.s32.totalorder %s34, 1
      %p237 = por %p235, %p236
      %p239 = scmp.ne.s32.totalorder %s224, %s238
      %p240 = scmp.eq.s32.totalorder %s34, 0
      %p241 = por %p239, %p240
      %s242 = ssub.s32 %s35, %s47
      %s243 = ssub.s32 %s36, %s43
      %s244 = sor.u32 %s242, %s243
      %p245 = scmp.eq.s32.totalorder %s244, 0
      %s247 = sadd.s32 %s246, 1
      %s248 = scalar_select %p245, %s246, %s247
      %p251 = pneg %p245
      %p252 = scmp.eq.s32.totalorder %s28, 1
      %p253 = por %p251, %p252
      %p254 = scmp.ne.s32.totalorder %s246, %s249
      %p255 = scmp.eq.s32.totalorder %s28, 0
      %p256 = por %p254, %p255
      %p257 = scmp.ne.s32.totalorder %s246, %s249
      %p258 = scmp.eq.s32.totalorder %s33, 1
      %p259 = por %p257, %p258
      %p260 = scmp.ne.s32.totalorder %s249, %s250
      %p261 = scmp.eq.s32.totalorder %s33, 0
      %p262 = por %p260, %p261
      %p263 = scmp.ne.s32.totalorder %s249, %s250
      %p264 = scmp.eq.s32.totalorder %s34, 1
      %p265 = por %p263, %p264
      %p267 = scmp.ne.s32.totalorder %s250, %s266
      %p268 = scmp.eq.s32.totalorder %s34, 0
      %p269 = por %p267, %p268
      %s270 = ssub.s32 %s35, %s47
      %s271 = ssub.s32 %s36, %s43
      %s272 = sor.u32 %s270, %s271
      %p273 = scmp.eq.s32.totalorder %s272, 0
      %s275 = sadd.s32 %s274, 1
      %s276 = scalar_select %p273, %s274, %s275
      %p279 = pneg %p273
      %p280 = scmp.eq.s32.totalorder %s28, 1
      %p281 = por %p279, %p280
      %p282 = scmp.ne.s32.totalorder %s274, %s277
      %p283 = scmp.eq.s32.totalorder %s28, 0
      %p284 = por %p282, %p283
      %p285 = scmp.ne.s32.totalorder %s274, %s277
      %p286 = scmp.eq.s32.totalorder %s33, 1
      %p287 = por %p285, %p286
      %p288 = scmp.ne.s32.totalorder %s277, %s278
      %p289 = scmp.eq.s32.totalorder %s33, 0
      %p290 = por %p288, %p289
      %p291 = scmp.ne.s32.totalorder %s277, %s278
      %p292 = scmp.eq.s32.totalorder %s34, 1
      %p293 = por %p291, %p292
      %p295 = scmp.ne.s32.totalorder %s278, %s294
      %p296 = scmp.eq.s32.totalorder %s34, 0
      %p297 = por %p295, %p296
      %p298 = scmp.le.s32.totalorder 1, %s28
      %p299 = scmp.lt.s32.totalorder %s28, 3
      %p300 = pnand %p298, %p299
      %p301 = pneg %p300
      // Predicated region
      $region9: #{tpu_custom_call.1} parent=5 // pred_check
        _
      $region10: #{tpu_custom_call.1} parent=5 // pred_check_branch
        %303 = sbr.rel (%p300) target = $region12
      $region11: #{tpu_custom_call.1} parent=5 // pred_region
        %s304 = ssub.s32 %s28, 1
        // Predicated region
        $region13: #{tpu_custom_call.1} parent=11 // pred_check
          %p305 = pneg %p87
        $region14: #{tpu_custom_call.1} parent=11 // pred_check_branch
          %307 = sbr.rel (%p305) target = $region16
        $region15: #{tpu_custom_call.1} parent=11 // pred_region
          %s309 = ssub.s32 512, 512
          %310 = vsyncadd [#allocation9], %s309
          %s311 = sshll.u32 [#allocation8], 4
          %s312 = int_to_ptr.vmem [resolvable:$true] %s311
          %317 = dma.hbm_to_vmem [thread:$0]  %s1, 512, %s312, [#allocation9], 128, 128, 8
        $region16: #{tpu_custom_call.1} parent=11 // pred_fallthru
          _
        // Predicated region
        $region17: #{tpu_custom_call.1} parent=11 // pred_check
          %p318 = pneg %p108
        $region18: #{tpu_custom_call.1} parent=11 // pred_check_branch
          %320 = sbr.rel (%p318) target = $region20
        $region19: #{tpu_custom_call.1} parent=11 // pred_region
          _
        $region20: #{tpu_custom_call.1} parent=11 // pred_fallthru
          _
        // Predicated region
        $region21: #{tpu_custom_call.1} parent=11 // pred_check
          %p321 = pneg %p129
        $region22: #{tpu_custom_call.1} parent=11 // pred_check_branch
          %323 = sbr.rel (%p321) target = $region24
        $region23: #{tpu_custom_call.1} parent=11 // pred_region
          %s325 = ssub.s32 512, 512
          %326 = vsyncadd [#allocation9], %s325
          %s327 = sshll.u32 [#allocation10], 4
          %s328 = int_to_ptr.vmem [resolvable:$true] %s327
          %333 = dma.hbm_to_vmem [thread:$0]  %s3, 512, %s328, [#allocation9], 128, 128, 8
        $region24: #{tpu_custom_call.1} parent=11 // pred_fallthru
          _
        // Predicated region
        $region25: #{tpu_custom_call.1} parent=11 // pred_check
          %p334 = pneg %p150
        $region26: #{tpu_custom_call.1} parent=11 // pred_check_branch
          %336 = sbr.rel (%p334) target = $region28
        $region27: #{tpu_custom_call.1} parent=11 // pred_region
          _
        $region28: #{tpu_custom_call.1} parent=11 // pred_fallthru
          _
        // Predicated region
        $region29: #{tpu_custom_call.1} parent=11 // pred_check
          %p337 = pneg %p171
        $region30: #{tpu_custom_call.1} parent=11 // pred_check_branch
          %339 = sbr.rel (%p337) target = $region32
        $region31: #{tpu_custom_call.1} parent=11 // pred_region
          %s341 = ssub.s32 512, 512
          %342 = vsyncadd [#allocation12], %s341
          %s343 = sshll.u32 [#allocation11], 4
          %s344 = int_to_ptr.vmem [resolvable:$true] %s343
          %349 = dma.hbm_to_vmem [thread:$0]  %s5, 512, %s344, [#allocation12], 128, 128, 8
        $region32: #{tpu_custom_call.1} parent=11 // pred_fallthru
          _
        // Predicated region
        $region33: #{tpu_custom_call.1} parent=11 // pred_check
          %p350 = pneg %p192
        $region34: #{tpu_custom_call.1} parent=11 // pred_check_branch
          %352 = sbr.rel (%p350) target = $region36
        $region35: #{tpu_custom_call.1} parent=11 // pred_region
          _
        $region36: #{tpu_custom_call.1} parent=11 // pred_fallthru
          _
        // Predicated region
        $region37: #{tpu_custom_call.1} parent=11 // pred_check
          %p353 = pneg %p213
        $region38: #{tpu_custom_call.1} parent=11 // pred_check_branch
          %355 = sbr.rel (%p353) target = $region40
        $region39: #{tpu_custom_call.1} parent=11 // pred_region
          %s357 = ssub.s32 512, 512
          %358 = vsyncadd [#allocation12], %s357
          %s359 = sshll.u32 [#allocation13], 4
          %s360 = int_to_ptr.vmem [resolvable:$true] %s359
          %365 = dma.hbm_to_vmem [thread:$0]  %s7, 512, %s360, [#allocation12], 128, 128, 8
        $region40: #{tpu_custom_call.1} parent=11 // pred_fallthru
          _
        // Predicated region
        $region41: #{tpu_custom_call.1} parent=11 // pred_check
          %p366 = pneg %p234
        $region42: #{tpu_custom_call.1} parent=11 // pred_check_branch
          %368 = sbr.rel (%p366) target = $region44
        $region43: #{tpu_custom_call.1} parent=11 // pred_region
          _
        $region44: #{tpu_custom_call.1} parent=11 // pred_fallthru
          _
      $region12: #{tpu_custom_call.1} parent=5 // pred_fallthru
        _
      %p369 = scmp.lt.s32.totalorder %s28, 2
      // Predicated region
      $region45: #{tpu_custom_call.1} parent=5 // pred_check
        %p370 = pneg %p369
      $region46: #{tpu_custom_call.1} parent=5 // pred_check_branch
        %372 = sbr.rel (%p370) target = $region48
      $region47: #{tpu_custom_call.1} parent=5 // pred_region
        // Predicated region
        $region49: #{tpu_custom_call.1} parent=47 // pred_check
          %p373 = pneg %p60
        $region50: #{tpu_custom_call.1} parent=47 // pred_check_branch
          %375 = sbr.rel (%p373) target = $region52
        $region51: #{tpu_custom_call.1} parent=47 // pred_region
          %s376 = sand.u32 %s50, 1
          %s377 = scalar_lea.sflag [#allocation6], %s376
          %s378 = sand.u32 %s50, 1
          %s379 = smul.addr %s378, 8
          %s380 = scalar_lea.vmem [#allocation5], %s379
          %s382 = ssub.s32 128, 128
          %383 = vsyncadd %s377, %s382
          %s384 = smul.addr %s35, 128
          %s385 = scalar_lea.hbm %s0, %s384
          %s387 = sshll.u32 %s380, 4
          %s388 = int_to_ptr.vmem [resolvable:$true] %s387
          %390 = dma.hbm_to_vmem [thread:$0]  %s385, 128, %s388, %s377
        $region52: #{tpu_custom_call.1} parent=47 // pred_fallthru
          _
      $region48: #{tpu_custom_call.1} parent=5 // pred_fallthru
        _
      %p391 = scmp.le.s32.totalorder 1, %s28
      %p392 = scmp.lt.s32.totalorder %s28, 3
      %p393 = pnand %p391, %p392
      %p394 = pneg %p393
      // Predicated region
      $region53: #{tpu_custom_call.1} parent=5 // pred_check
        _
      $region54: #{tpu_custom_call.1} parent=5 // pred_check_branch
        %396 = sbr.rel (%p393) target = $region56
      $region55: #{tpu_custom_call.1} parent=5 // pred_region
        %s397 = ssub.s32 %s28, 1
        %s398 = sand.u32 %s53, 1
        %s399 = scalar_lea.sflag [#allocation6], %s398
        %s400 = sand.u32 %s53, 1
        %s401 = smul.addr %s400, 8
        %s402 = scalar_lea.vmem [#allocation5], %s401
        // Predicated region
        $region57: #{tpu_custom_call.1} parent=55 // pred_check
          %p403 = pneg %p66
        $region58: #{tpu_custom_call.1} parent=55 // pred_check_branch
          %405 = sbr.rel (%p403) target = $region60
        $region59: #{tpu_custom_call.1} parent=55 // pred_region
          %406 = dma.done %s399, 128
        $region60: #{tpu_custom_call.1} parent=55 // pred_fallthru
          _
        // Predicated region
        $region61: #{tpu_custom_call.1} parent=55 // pred_check
          %p407 = pneg %p87
        $region62: #{tpu_custom_call.1} parent=55 // pred_check_branch
          %409 = sbr.rel (%p407) target = $region64
        $region63: #{tpu_custom_call.1} parent=55 // pred_region
          %410 = dma.done [#allocation9], 512
        $region64: #{tpu_custom_call.1} parent=55 // pred_fallthru
          _
        // Predicated region
        $region65: #{tpu_custom_call.1} parent=55 // pred_check
          %p411 = pneg %p129
        $region66: #{tpu_custom_call.1} parent=55 // pred_check_branch
          %413 = sbr.rel (%p411) target = $region68
        $region67: #{tpu_custom_call.1} parent=55 // pred_region
          %414 = dma.done [#allocation9], 512
        $region68: #{tpu_custom_call.1} parent=55 // pred_fallthru
          _
        // Predicated region
        $region69: #{tpu_custom_call.1} parent=55 // pred_check
          %p415 = pneg %p171
        $region70: #{tpu_custom_call.1} parent=55 // pred_check_branch
          %417 = sbr.rel (%p415) target = $region72
        $region71: #{tpu_custom_call.1} parent=55 // pred_region
          %418 = dma.done [#allocation12], 512
        $region72: #{tpu_custom_call.1} parent=55 // pred_fallthru
          _
        // Predicated region
        $region73: #{tpu_custom_call.1} parent=55 // pred_check
          %p419 = pneg %p213
        $region74: #{tpu_custom_call.1} parent=55 // pred_check_branch
          %421 = sbr.rel (%p419) target = $region76
        $region75: #{tpu_custom_call.1} parent=55 // pred_region
          %422 = dma.done [#allocation12], 512
        $region76: #{tpu_custom_call.1} parent=55 // pred_fallthru
          _
        %s423 = sand.u32 %s53, 1
        %s424 = scalar_lea.sflag [#allocation6], %s423
        %s425 = sand.u32 %s53, 1
        %s426 = smul.addr %s425, 8
        %s427 = scalar_lea.vmem [#allocation5], %s426
        %p428 = pneg %p66
        %p429 = pneg %p63
        %p430 = pneg %p87
        %p431 = pneg %p84
        %p432 = pneg %p108
        %p433 = pneg %p105
        %p434 = pneg %p129
        %p435 = pneg %p126
        %p436 = pneg %p150
        %p437 = pneg %p147
        %p438 = pneg %p171
        %p439 = pneg %p168
        %p440 = pneg %p192
        %p441 = pneg %p189
        %p442 = pneg %p213
        %p443 = pneg %p210
        %p444 = pneg %p234
        %p445 = pneg %p231
        %p446 = pneg %p262
        %p447 = pneg %p259
        %s448 = sand.u32 %s249, 1
        %s449 = scalar_lea.sflag [#allocation7], %s448
        %s450 = sand.u32 %s249, 1
        %s451 = smul.addr %s450, 8
        %s452 = scalar_lea.vmem [#allocation14], %s451
        %p453 = pneg %p290
        %p454 = pneg %p287
        %s455 = sand.u32 %s277, 1
        %s456 = scalar_lea.sflag [#allocation16], %s455
        %s457 = sand.u32 %s277, 1
        %s458 = smul.addr %s457, 32
        %s459 = scalar_lea.vmem [#allocation15], %s458
        %p460 = scmp.eq.s32.totalorder %s38, 0
        // Predicated region
        $region77: #{tpu_custom_call.1} parent=55 // pred_check
          %p461 = pneg %p460
        $region78: #{tpu_custom_call.1} parent=55 // pred_check_branch
          %463 = sbr.rel (%p461) target = $region80
        $region79: #{tpu_custom_call.1} parent=55 // pred_region
          %v464 = vld [vmem:[%s402] sm:$0xff]
          %v465 = vld [vmem:[#allocation10] sm:$0xff]
          %v466 = vld [vmem:[#allocation10 + $0x8] sm:$0xff]
          %v467 = vld [vmem:[#allocation10 + $0x10] sm:$0xff]
          %v468 = vld [vmem:[#allocation10 + $0x18] sm:$0xff]
          %v469 = vld [vmem:[%s4] sm:$0x1]
          %v471 = vlaneseq
          %v472 = vshrl.u32 %v471, 7
          %v473 = vsub.s32 0, %v472
          %v474 = vrot.slane %v469, %v473
          %vm476 = vcmask 261120
          %v478 = vsel %vm476, %v464, 0
          %480 = vmatprep.subr.mxu0 0.0
          %481 = vmatpush1.msra.mxu0 %v465
          %482 = vmatprep.subr.mxu0 0.0
          %483 = vmatpush1.msra.mxu0 %v466
          %484 = vmatprep.subr.mxu0 0.0
          %485 = vmatpush1.msra.mxu0 %v467
          %486 = vmatprep.subr.mxu0 0.0
          %487 = vmatpush1.msra.mxu0 %v468
          %488 = vmatprep.subr.mxu0 0.0
          %489 = vmatpush1.msra.mxu0 0.0
          %490 = vmatprep.subr.mxu0 0.0
          %491 = vmatpush1.msra.mxu0 0.0
          %492 = vmatprep.subr.mxu0 0.0
          %493 = vmatpush1.msra.mxu0 0.0
          %494 = vmatprep.subr.mxu0 0.0
          %495 = vmatpush1.msra.mxu0 0.0
          %496 = vmatprep.subr.mxu0 0.0
          %497 = vmatpush1.msra.mxu0 0.0
          %498 = vmatprep.subr.mxu0 0.0
          %499 = vmatpush1.msra.mxu0 0.0
          %500 = vmatprep.subr.mxu0 0.0
          %501 = vmatpush1.msra.mxu0 0.0
          %502 = vmatprep.subr.mxu0 0.0
          %503 = vmatpush1.msra.mxu0 0.0
          %504 = vmatprep.subr.mxu0 0.0
          %505 = vmatpush1.msra.mxu0 0.0
          %506 = vmatprep.subr.mxu0 0.0
          %507 = vmatpush1.msra.mxu0 0.0
          %508 = vmatprep.subr.mxu0 0.0
          %509 = vmatpush1.msra.mxu0 0.0
          %510 = vmatprep.subr.mxu0 0.0
          %511 = vmatpush1.msra.mxu0 0.0
          %512 = vmatprep.subr.mxu0 0.0
          %513 = vmatpush1.msra.mxu0 0.0
          %514 = vmatprep.subr.mxu0 0.0
          %515 = vmatpush1.msra.mxu0 0.0
          %516 = vmatprep.subr.mxu0 0.0
          %517 = vmatpush1.msra.mxu0 0.0
          %518 = vmatprep.subr.mxu0 0.0
          %519 = vmatpush1.msra.mxu0 0.0
          %520 = vmatprep.subr.mxu0 0.0
          %521 = vmatpush1.msra.mxu0 0.0
          %522 = vmatprep.subr.mxu0 0.0
          %523 = vmatpush1.msra.mxu0 0.0
          %524 = vmatprep.subr.mxu0 0.0
          %525 = vmatpush1.msra.mxu0 0.0
          %526 = vmatprep.subr.mxu0 0.0
          %527 = vmatpush1.msra.mxu0 0.0
          %528 = vmatprep.subr.mxu0 0.0
          %529 = vmatpush1.msra.mxu0 0.0
          %530 = vmatprep.subr.mxu0 0.0
          %531 = vmatpush1.msra.mxu0 0.0
          %532 = vmatprep.subr.mxu0 0.0
          %533 = vmatpush1.msra.mxu0 0.0
          %534 = vmatprep.subr.mxu0 0.0
          %535 = vmatpush1.msra.mxu0 0.0
          %536 = vmatprep.subr.mxu0 0.0
          %537 = vmatpush1.msra.mxu0 0.0
          %538 = vmatprep.subr.mxu0 0.0
          %539 = vmatpush1.msra.mxu0 0.0
          %540 = vmatprep.subr.mxu0 0.0
          %541 = vmatpush1.msra.mxu0 0.0
          %542 = vmatprep.subr.mxu0 0.0
          %543 = vmatpush1.msra.mxu0 0.0
          %544 = vmatprep.mubr.f32.mxu0 0.0
          %545 = vmatmul.mubr.f32.gmra.mrb[0].mxu0 %v478
          %v546 = vpop.f32.mrb[0].mxu0
          %v547 = vadd.f32 %v474, %v546
          %v548 = vpop.f32.mrb[0].mxu0
          %549 = vdwg.mxu0
          %550 = vst.msk [vmem:[#allocation2] sm:$0xff] %vm476, %v547
          %v551 = vld [vmem:[#allocation11] sm:$0xff]
          %v552 = vld [vmem:[#allocation11 + $0x8] sm:$0xff]
          %v553 = vld [vmem:[#allocation11 + $0x10] sm:$0xff]
          %v554 = vld [vmem:[#allocation11 + $0x18] sm:$0xff]
          %v555 = vld [vmem:[%s6] sm:$0x1]
          %v557 = vlaneseq
          %v558 = vshrl.u32 %v557, 7
          %v559 = vsub.s32 0, %v558
          %v560 = vrot.slane %v555, %v559
          %562 = vmatprep.subr.mxu0 0.0
          %563 = vmatpush1.msra.mxu0 %v551
          %564 = vmatprep.subr.mxu0 0.0
          %565 = vmatpush1.msra.mxu0 %v552
          %566 = vmatprep.subr.mxu0 0.0
          %567 = vmatpush1.msra.mxu0 %v553
          %568 = vmatprep.subr.mxu0 0.0
          %569 = vmatpush1.msra.mxu0 %v554
          %570 = vmatprep.subr.mxu0 0.0
          %571 = vmatpush1.msra.mxu0 0.0
          %572 = vmatprep.subr.mxu0 0.0
          %573 = vmatpush1.msra.mxu0 0.0
          %574 = vmatprep.subr.mxu0 0.0
          %575 = vmatpush1.msra.mxu0 0.0
          %576 = vmatprep.subr.mxu0 0.0
          %577 = vmatpush1.msra.mxu0 0.0
          %578 = vmatprep.subr.mxu0 0.0
          %579 = vmatpush1.msra.mxu0 0.0
          %580 = vmatprep.subr.mxu0 0.0
          %581 = vmatpush1.msra.mxu0 0.0
          %582 = vmatprep.subr.mxu0 0.0
          %583 = vmatpush1.msra.mxu0 0.0
          %584 = vmatprep.subr.mxu0 0.0
          %585 = vmatpush1.msra.mxu0 0.0
          %586 = vmatprep.subr.mxu0 0.0
          %587 = vmatpush1.msra.mxu0 0.0
          %588 = vmatprep.subr.mxu0 0.0
          %589 = vmatpush1.msra.mxu0 0.0
          %590 = vmatprep.subr.mxu0 0.0
          %591 = vmatpush1.msra.mxu0 0.0
          %592 = vmatprep.subr.mxu0 0.0
          %593 = vmatpush1.msra.mxu0 0.0
          %594 = vmatprep.subr.mxu0 0.0
          %595 = vmatpush1.msra.mxu0 0.0
          %596 = vmatprep.subr.mxu0 0.0
          %597 = vmatpush1.msra.mxu0 0.0
          %598 = vmatprep.subr.mxu0 0.0
          %599 = vmatpush1.msra.mxu0 0.0
          %600 = vmatprep.subr.mxu0 0.0
          %601 = vmatpush1.msra.mxu0 0.0
          %602 = vmatprep.subr.mxu0 0.0
          %603 = vmatpush1.msra.mxu0 0.0
          %604 = vmatprep.subr.mxu0 0.0
          %605 = vmatpush1.msra.mxu0 0.0
          %606 = vmatprep.subr.mxu0 0.0
          %607 = vmatpush1.msra.mxu0 0.0
          %608 = vmatprep.subr.mxu0 0.0
          %609 = vmatpush1.msra.mxu0 0.0
          %610 = vmatprep.subr.mxu0 0.0
          %611 = vmatpush1.msra.mxu0 0.0
          %612 = vmatprep.subr.mxu0 0.0
          %613 = vmatpush1.msra.mxu0 0.0
          %614 = vmatprep.subr.mxu0 0.0
          %615 = vmatpush1.msra.mxu0 0.0
          %616 = vmatprep.subr.mxu0 0.0
          %617 = vmatpush1.msra.mxu0 0.0
          %618 = vmatprep.subr.mxu0 0.0
          %619 = vmatpush1.msra.mxu0 0.0
          %620 = vmatprep.subr.mxu0 0.0
          %621 = vmatpush1.msra.mxu0 0.0
          %622 = vmatprep.subr.mxu0 0.0
          %623 = vmatpush1.msra.mxu0 0.0
          %624 = vmatprep.subr.mxu0 0.0
          %625 = vmatpush1.msra.mxu0 0.0
          %626 = vmatprep.mubr.f32.mxu0 0.0
          %627 = vmatmul.mubr.f32.gmra.mrb[0].mxu0 %v478
          %v628 = vpop.f32.mrb[0].mxu0
          %v629 = vadd.f32 %v560, %v628
          %v630 = vpop.f32.mrb[0].mxu0
          %631 = vdwg.mxu0
          %632 = vst.msk [vmem:[#allocation3] sm:$0xff] %vm476, %v629
        $region80: #{tpu_custom_call.1} parent=55 // pred_fallthru
          _
        %v633 = vld [vmem:[%s402] sm:$0xff]
        %v634 = vld [vmem:[#allocation8] sm:$0xff]
        %v635 = vld [vmem:[#allocation8 + $0x8] sm:$0xff]
        %v636 = vld [vmem:[#allocation8 + $0x10] sm:$0xff]
        %v637 = vld [vmem:[#allocation8 + $0x18] sm:$0xff]
        %v638 = vld [vmem:[%s2] sm:$0x1]
        %v640 = vlaneseq
        %v641 = vshrl.u32 %v640, 7
        %v642 = vsub.s32 0, %v641
        %v643 = vrot.slane %v638, %v642
        %vm645 = vcmask 261120
        %v647 = vsel %vm645, %v633, 0
        %649 = vmatprep.subr.mxu0 0.0
        %650 = vmatpush1.msra.mxu0 %v634
        %651 = vmatprep.subr.mxu0 0.0
        %652 = vmatpush1.msra.mxu0 %v635
        %653 = vmatprep.subr.mxu0 0.0
        %654 = vmatpush1.msra.mxu0 %v636
        %655 = vmatprep.subr.mxu0 0.0
        %656 = vmatpush1.msra.mxu0 %v637
        %657 = vmatprep.subr.mxu0 0.0
        %658 = vmatpush1.msra.mxu0 0.0
        %659 = vmatprep.subr.mxu0 0.0
        %660 = vmatpush1.msra.mxu0 0.0
        %661 = vmatprep.subr.mxu0 0.0
        %662 = vmatpush1.msra.mxu0 0.0
        %663 = vmatprep.subr.mxu0 0.0
        %664 = vmatpush1.msra.mxu0 0.0
        %665 = vmatprep.subr.mxu0 0.0
        %666 = vmatpush1.msra.mxu0 0.0
        %667 = vmatprep.subr.mxu0 0.0
        %668 = vmatpush1.msra.mxu0 0.0
        %669 = vmatprep.subr.mxu0 0.0
        %670 = vmatpush1.msra.mxu0 0.0
        %671 = vmatprep.subr.mxu0 0.0
        %672 = vmatpush1.msra.mxu0 0.0
        %673 = vmatprep.subr.mxu0 0.0
        %674 = vmatpush1.msra.mxu0 0.0
        %675 = vmatprep.subr.mxu0 0.0
        %676 = vmatpush1.msra.mxu0 0.0
        %677 = vmatprep.subr.mxu0 0.0
        %678 = vmatpush1.msra.mxu0 0.0
        %679 = vmatprep.subr.mxu0 0.0
        %680 = vmatpush1.msra.mxu0 0.0
        %681 = vmatprep.subr.mxu0 0.0
        %682 = vmatpush1.msra.mxu0 0.0
        %683 = vmatprep.subr.mxu0 0.0
        %684 = vmatpush1.msra.mxu0 0.0
        %685 = vmatprep.subr.mxu0 0.0
        %686 = vmatpush1.msra.mxu0 0.0
        %687 = vmatprep.subr.mxu0 0.0
        %688 = vmatpush1.msra.mxu0 0.0
        %689 = vmatprep.subr.mxu0 0.0
        %690 = vmatpush1.msra.mxu0 0.0
        %691 = vmatprep.subr.mxu0 0.0
        %692 = vmatpush1.msra.mxu0 0.0
        %693 = vmatprep.subr.mxu0 0.0
        %694 = vmatpush1.msra.mxu0 0.0
        %695 = vmatprep.subr.mxu0 0.0
        %696 = vmatpush1.msra.mxu0 0.0
        %697 = vmatprep.subr.mxu0 0.0
        %698 = vmatpush1.msra.mxu0 0.0
        %699 = vmatprep.subr.mxu0 0.0
        %700 = vmatpush1.msra.mxu0 0.0
        %701 = vmatprep.subr.mxu0 0.0
        %702 = vmatpush1.msra.mxu0 0.0
        %703 = vmatprep.subr.mxu0 0.0
        %704 = vmatpush1.msra.mxu0 0.0
        %705 = vmatprep.subr.mxu0 0.0
        %706 = vmatpush1.msra.mxu0 0.0
        %707 = vmatprep.subr.mxu0 0.0
        %708 = vmatpush1.msra.mxu0 0.0
        %709 = vmatprep.subr.mxu0 0.0
        %710 = vmatpush1.msra.mxu0 0.0
        %711 = vmatprep.subr.mxu0 0.0
        %712 = vmatpush1.msra.mxu0 0.0
        %713 = vmatprep.mubr.f32.mxu0 0.0
        %714 = vmatmul.mubr.f32.gmra.mrb[0].mxu0 %v647
        %v715 = vpop.f32.mrb[0].mxu0
        %v716 = vadd.f32 %v643, %v715
        %v717 = vpop.f32.mrb[0].mxu0
        %718 = vdwg.mxu0
        %v719 = vld [vmem:[#allocation2] sm:$0xff]
        %v720 = vld [vmem:[#allocation3] sm:$0xff]
        %vm721 = vcmask 64512
        %v723 = vsel %vm721, %v716, 0
        %v726 = vsel %vm721, %v719, 0
        %728 = vmatprep.subr.mxu0 0.0
        %729 = vmatpush1.xpose.msra.mxu0 %v726
        %730 = vmatprep.subr.mxu0 0.0
        %731 = vmatpush1.xpose.msra.mxu0 0.0
        %732 = vmatprep.subr.mxu0 0.0
        %733 = vmatpush1.xpose.msra.mxu0 0.0
        %734 = vmatprep.subr.mxu0 0.0
        %735 = vmatpush1.xpose.msra.mxu0 0.0
        %736 = vmatprep.subr.mxu0 0.0
        %737 = vmatpush1.xpose.msra.mxu0 0.0
        %738 = vmatprep.subr.mxu0 0.0
        %739 = vmatpush1.xpose.msra.mxu0 0.0
        %740 = vmatprep.subr.mxu0 0.0
        %741 = vmatpush1.xpose.msra.mxu0 0.0
        %742 = vmatprep.subr.mxu0 0.0
        %743 = vmatpush1.xpose.msra.mxu0 0.0
        %744 = vmatprep.subr.mxu0 0.0
        %745 = vmatpush1.xpose.msra.mxu0 0.0
        %746 = vmatprep.subr.mxu0 0.0
        %747 = vmatpush1.xpose.msra.mxu0 0.0
        %748 = vmatprep.subr.mxu0 0.0
        %749 = vmatpush1.xpose.msra.mxu0 0.0
        %750 = vmatprep.subr.mxu0 0.0
        %751 = vmatpush1.xpose.msra.mxu0 0.0
        %752 = vmatprep.subr.mxu0 0.0
        %753 = vmatpush1.xpose.msra.mxu0 0.0
        %754 = vmatprep.subr.mxu0 0.0
        %755 = vmatpush1.xpose.msra.mxu0 0.0
        %756 = vmatprep.subr.mxu0 0.0
        %757 = vmatpush1.xpose.msra.mxu0 0.0
        %758 = vmatprep.subr.mxu0 0.0
        %759 = vmatpush1.xpose.msra.mxu0 0.0
        %760 = vmatprep.subr.mxu0 0.0
        %761 = vmatpush1.xpose.msra.mxu0 0.0
        %762 = vmatprep.subr.mxu0 0.0
        %763 = vmatpush1.xpose.msra.mxu0 0.0
        %764 = vmatprep.subr.mxu0 0.0
        %765 = vmatpush1.xpose.msra.mxu0 0.0
        %766 = vmatprep.subr.mxu0 0.0
        %767 = vmatpush1.xpose.msra.mxu0 0.0
        %768 = vmatprep.subr.mxu0 0.0
        %769 = vmatpush1.xpose.msra.mxu0 0.0
        %770 = vmatprep.subr.mxu0 0.0
        %771 = vmatpush1.xpose.msra.mxu0 0.0
        %772 = vmatprep.subr.mxu0 0.0
        %773 = vmatpush1.xpose.msra.mxu0 0.0
        %774 = vmatprep.subr.mxu0 0.0
        %775 = vmatpush1.xpose.msra.mxu0 0.0
        %776 = vmatprep.subr.mxu0 0.0
        %777 = vmatpush1.xpose.msra.mxu0 0.0
        %778 = vmatprep.subr.mxu0 0.0
        %779 = vmatpush1.xpose.msra.mxu0 0.0
        %780 = vmatprep.subr.mxu0 0.0
        %781 = vmatpush1.xpose.msra.mxu0 0.0
        %782 = vmatprep.subr.mxu0 0.0
        %783 = vmatpush1.xpose.msra.mxu0 0.0
        %784 = vmatprep.subr.mxu0 0.0
        %785 = vmatpush1.xpose.msra.mxu0 0.0
        %786 = vmatprep.subr.mxu0 0.0
        %787 = vmatpush1.xpose.msra.mxu0 0.0
        %788 = vmatprep.subr.mxu0 0.0
        %789 = vmatpush1.xpose.msra.mxu0 0.0
        %790 = vmatprep.subr.mxu0 0.0
        %791 = vmatpush1.xpose.msra.mxu0 0.0
        %792 = vmatprep.mubr.f32.mxu0 0.0
        %793 = vmatmul.mubr.f32.gmra.mrb[0].mxu0 %v723
        %v794 = vpop.f32.mrb[0].mxu0
        %v795 = vadd.f32 0.0, %v794
        %v796 = vpop.f32.mrb[0].mxu0
        %797 = vdwg.mxu0
        %v798 = vsel %vm721, %v795, -inf
        %799 = vmax.xlane.f32.xlu0 %v798
        %v800 = vpop.xlane.xlu0 %799
        %v801 = vsub.f32 %v795, %v800
        %v802 = vmul.f32 %v801, 1.442695
        %v803 = vpow.pop %v802
        %v804 = vsel %vm721, %v803, 0.0
        %805 = vadd.xlane.f32.xlu0 %v804
        %v806 = vpop.xlane.xlu0 %805
        %v807 = vrcp.pop %v806
        %v808 = vmul.f32 %v803, %v807
        %809 = vst.msk [vmem:[%s459] sm:$0xff] %vm721, %v808
        %v811 = vsel %vm721, %v808, 0
        %813 = vmatprep.subr.mxu0 0.0
        %814 = vmatpush1.msra.mxu0 %v720
        %815 = vmatprep.subr.mxu0 0.0
        %816 = vmatpush1.msra.mxu0 0.0
        %817 = vmatprep.subr.mxu0 0.0
        %818 = vmatpush1.msra.mxu0 0.0
        %819 = vmatprep.subr.mxu0 0.0
        %820 = vmatpush1.msra.mxu0 0.0
        %821 = vmatprep.subr.mxu0 0.0
        %822 = vmatpush1.msra.mxu0 0.0
        %823 = vmatprep.subr.mxu0 0.0
        %824 = vmatpush1.msra.mxu0 0.0
        %825 = vmatprep.subr.mxu0 0.0
        %826 = vmatpush1.msra.mxu0 0.0
        %827 = vmatprep.subr.mxu0 0.0
        %828 = vmatpush1.msra.mxu0 0.0
        %829 = vmatprep.subr.mxu0 0.0
        %830 = vmatpush1.msra.mxu0 0.0
        %831 = vmatprep.subr.mxu0 0.0
        %832 = vmatpush1.msra.mxu0 0.0
        %833 = vmatprep.subr.mxu0 0.0
        %834 = vmatpush1.msra.mxu0 0.0
        %835 = vmatprep.subr.mxu0 0.0
        %836 = vmatpush1.msra.mxu0 0.0
        %837 = vmatprep.subr.mxu0 0.0
        %838 = vmatpush1.msra.mxu0 0.0
        %839 = vmatprep.subr.mxu0 0.0
        %840 = vmatpush1.msra.mxu0 0.0
        %841 = vmatprep.subr.mxu0 0.0
        %842 = vmatpush1.msra.mxu0 0.0
        %843 = vmatprep.subr.mxu0 0.0
        %844 = vmatpush1.msra.mxu0 0.0
        %845 = vmatprep.subr.mxu0 0.0
        %846 = vmatpush1.msra.mxu0 0.0
        %847 = vmatprep.subr.mxu0 0.0
        %848 = vmatpush1.msra.mxu0 0.0
        %849 = vmatprep.subr.mxu0 0.0
        %850 = vmatpush1.msra.mxu0 0.0
        %851 = vmatprep.subr.mxu0 0.0
        %852 = vmatpush1.msra.mxu0 0.0
        %853 = vmatprep.subr.mxu0 0.0
        %854 = vmatpush1.msra.mxu0 0.0
        %855 = vmatprep.subr.mxu0 0.0
        %856 = vmatpush1.msra.mxu0 0.0
        %857 = vmatprep.subr.mxu0 0.0
        %858 = vmatpush1.msra.mxu0 0.0
        %859 = vmatprep.subr.mxu0 0.0
        %860 = vmatpush1.msra.mxu0 0.0
        %861 = vmatprep.subr.mxu0 0.0
        %862 = vmatpush1.msra.mxu0 0.0
        %863 = vmatprep.subr.mxu0 0.0
        %864 = vmatpush1.msra.mxu0 0.0
        %865 = vmatprep.subr.mxu0 0.0
        %866 = vmatpush1.msra.mxu0 0.0
        %867 = vmatprep.subr.mxu0 0.0
        %868 = vmatpush1.msra.mxu0 0.0
        %869 = vmatprep.subr.mxu0 0.0
        %870 = vmatpush1.msra.mxu0 0.0
        %871 = vmatprep.subr.mxu0 0.0
        %872 = vmatpush1.msra.mxu0 0.0
        %873 = vmatprep.subr.mxu0 0.0
        %874 = vmatpush1.msra.mxu0 0.0
        %875 = vmatprep.subr.mxu0 0.0
        %876 = vmatpush1.msra.mxu0 0.0
        %877 = vmatprep.mubr.f32.mxu0 0.0
        %878 = vmatmul.mubr.f32.gmra.mrb[0].mxu0 %v811
        %v879 = vpop.f32.mrb[0].mxu0
        %v880 = vadd.f32 0.0, %v879
        %v881 = vpop.f32.mrb[0].mxu0
        %882 = vdwg.mxu0
        %883 = vst.msk [vmem:[#allocation4] sm:$0xff] %vm721, %v880
        %v884 = vld [vmem:[#allocation2] sm:$0xff]
        %v885 = vld [vmem:[#allocation3] sm:$0xff]
        %886 = vrot.lane.b32.xlu0 %v716, 120
        %v887 = vpop.permute.xlu0 %886
        %889 = vrot.lane.b32.xlu0 %v884, 120
        %v890 = vpop.permute.xlu0 %889
        %v891 = vsel %vm721, %v887, 0
        %v893 = vsel %vm721, %v890, 0
        %895 = vmatprep.subr.mxu0 0.0
        %896 = vmatpush1.xpose.msra.mxu0 %v893
        %897 = vmatprep.subr.mxu0 0.0
        %898 = vmatpush1.xpose.msra.mxu0 0.0
        %899 = vmatprep.subr.mxu0 0.0
        %900 = vmatpush1.xpose.msra.mxu0 0.0
        %901 = vmatprep.subr.mxu0 0.0
        %902 = vmatpush1.xpose.msra.mxu0 0.0
        %903 = vmatprep.subr.mxu0 0.0
        %904 = vmatpush1.xpose.msra.mxu0 0.0
        %905 = vmatprep.subr.mxu0 0.0
        %906 = vmatpush1.xpose.msra.mxu0 0.0
        %907 = vmatprep.subr.mxu0 0.0
        %908 = vmatpush1.xpose.msra.mxu0 0.0
        %909 = vmatprep.subr.mxu0 0.0
        %910 = vmatpush1.xpose.msra.mxu0 0.0
        %911 = vmatprep.subr.mxu0 0.0
        %912 = vmatpush1.xpose.msra.mxu0 0.0
        %913 = vmatprep.subr.mxu0 0.0
        %914 = vmatpush1.xpose.msra.mxu0 0.0
        %915 = vmatprep.subr.mxu0 0.0
        %916 = vmatpush1.xpose.msra.mxu0 0.0
        %917 = vmatprep.subr.mxu0 0.0
        %918 = vmatpush1.xpose.msra.mxu0 0.0
        %919 = vmatprep.subr.mxu0 0.0
        %920 = vmatpush1.xpose.msra.mxu0 0.0
        %921 = vmatprep.subr.mxu0 0.0
        %922 = vmatpush1.xpose.msra.mxu0 0.0
        %923 = vmatprep.subr.mxu0 0.0
        %924 = vmatpush1.xpose.msra.mxu0 0.0
        %925 = vmatprep.subr.mxu0 0.0
        %926 = vmatpush1.xpose.msra.mxu0 0.0
        %927 = vmatprep.subr.mxu0 0.0
        %928 = vmatpush1.xpose.msra.mxu0 0.0
        %929 = vmatprep.subr.mxu0 0.0
        %930 = vmatpush1.xpose.msra.mxu0 0.0
        %931 = vmatprep.subr.mxu0 0.0
        %932 = vmatpush1.xpose.msra.mxu0 0.0
        %933 = vmatprep.subr.mxu0 0.0
        %934 = vmatpush1.xpose.msra.mxu0 0.0
        %935 = vmatprep.subr.mxu0 0.0
        %936 = vmatpush1.xpose.msra.mxu0 0.0
        %937 = vmatprep.subr.mxu0 0.0
        %938 = vmatpush1.xpose.msra.mxu0 0.0
        %939 = vmatprep.subr.mxu0 0.0
        %940 = vmatpush1.xpose.msra.mxu0 0.0
        %941 = vmatprep.subr.mxu0 0.0
        %942 = vmatpush1.xpose.msra.mxu0 0.0
        %943 = vmatprep.subr.mxu0 0.0
        %944 = vmatpush1.xpose.msra.mxu0 0.0
        %945 = vmatprep.subr.mxu0 0.0
        %946 = vmatpush1.xpose.msra.mxu0 0.0
        %947 = vmatprep.subr.mxu0 0.0
        %948 = vmatpush1.xpose.msra.mxu0 0.0
        %949 = vmatprep.subr.mxu0 0.0
        %950 = vmatpush1.xpose.msra.mxu0 0.0
        %951 = vmatprep.subr.mxu0 0.0
        %952 = vmatpush1.xpose.msra.mxu0 0.0
        %953 = vmatprep.subr.mxu0 0.0
        %954 = vmatpush1.xpose.msra.mxu0 0.0
        %955 = vmatprep.subr.mxu0 0.0
        %956 = vmatpush1.xpose.msra.mxu0 0.0
        %957 = vmatprep.subr.mxu0 0.0
        %958 = vmatpush1.xpose.msra.mxu0 0.0
        %959 = vmatprep.mubr.f32.mxu0 0.0
        %960 = vmatmul.mubr.f32.gmra.mrb[0].mxu0 %v891
        %v961 = vpop.f32.mrb[0].mxu0
        %v962 = vadd.f32 0.0, %v961
        %v963 = vpop.f32.mrb[0].mxu0
        %964 = vdwg.mxu0
        %v965 = vsel %vm721, %v962, -inf
        %966 = vmax.xlane.f32.xlu0 %v965
        %v967 = vpop.xlane.xlu0 %966
        %v968 = vsub.f32 %v962, %v967
        %v969 = vmul.f32 %v968, 1.442695
        %v970 = vpow.pop %v969
        %v971 = vsel %vm721, %v970, 0.0
        %972 = vadd.xlane.f32.xlu0 %v971
        %v973 = vpop.xlane.xlu0 %972
        %v974 = vrcp.pop %v973
        %v975 = vmul.f32 %v970, %v974
        %s976 = scalar_lea.vmem %s459, 8 [#allocation15]
        %977 = vst.msk [vmem:[%s976] sm:$0xff] %vm721, %v975
        %979 = vrot.lane.b32.xlu0 %v885, 120
        %v980 = vpop.permute.xlu0 %979
        %v983 = vsel %vm721, %v975, 0
        %985 = vmatprep.subr.mxu0 0.0
        %986 = vmatpush1.msra.mxu0 %v980
        %987 = vmatprep.subr.mxu0 0.0
        %988 = vmatpush1.msra.mxu0 0.0
        %989 = vmatprep.subr.mxu0 0.0
        %990 = vmatpush1.msra.mxu0 0.0
        %991 = vmatprep.subr.mxu0 0.0
        %992 = vmatpush1.msra.mxu0 0.0
        %993 = vmatprep.subr.mxu0 0.0
        %994 = vmatpush1.msra.mxu0 0.0
        %995 = vmatprep.subr.mxu0 0.0
        %996 = vmatpush1.msra.mxu0 0.0
        %997 = vmatprep.subr.mxu0 0.0
        %998 = vmatpush1.msra.mxu0 0.0
        %999 = vmatprep.subr.mxu0 0.0
        %1000 = vmatpush1.msra.mxu0 0.0
        %1001 = vmatprep.subr.mxu0 0.0
        %1002 = vmatpush1.msra.mxu0 0.0
        %1003 = vmatprep.subr.mxu0 0.0
        %1004 = vmatpush1.msra.mxu0 0.0
        %1005 = vmatprep.subr.mxu0 0.0
        %1006 = vmatpush1.msra.mxu0 0.0
        %1007 = vmatprep.subr.mxu0 0.0
        %1008 = vmatpush1.msra.mxu0 0.0
        %1009 = vmatprep.subr.mxu0 0.0
        %1010 = vmatpush1.msra.mxu0 0.0
        %1011 = vmatprep.subr.mxu0 0.0
        %1012 = vmatpush1.msra.mxu0 0.0
        %1013 = vmatprep.subr.mxu0 0.0
        %1014 = vmatpush1.msra.mxu0 0.0
        %1015 = vmatprep.subr.mxu0 0.0
        %1016 = vmatpush1.msra.mxu0 0.0
        %1017 = vmatprep.subr.mxu0 0.0
        %1018 = vmatpush1.msra.mxu0 0.0
        %1019 = vmatprep.subr.mxu0 0.0
        %1020 = vmatpush1.msra.mxu0 0.0
        %1021 = vmatprep.subr.mxu0 0.0
        %1022 = vmatpush1.msra.mxu0 0.0
        %1023 = vmatprep.subr.mxu0 0.0
        %1024 = vmatpush1.msra.mxu0 0.0
        %1025 = vmatprep.subr.mxu0 0.0
        %1026 = vmatpush1.msra.mxu0 0.0
        %1027 = vmatprep.subr.mxu0 0.0
        %1028 = vmatpush1.msra.mxu0 0.0
        %1029 = vmatprep.subr.mxu0 0.0
        %1030 = vmatpush1.msra.mxu0 0.0
        %1031 = vmatprep.subr.mxu0 0.0
        %1032 = vmatpush1.msra.mxu0 0.0
        %1033 = vmatprep.subr.mxu0 0.0
        %1034 = vmatpush1.msra.mxu0 0.0
        %1035 = vmatprep.subr.mxu0 0.0
        %1036 = vmatpush1.msra.mxu0 0.0
        %1037 = vmatprep.subr.mxu0 0.0
        %1038 = vmatpush1.msra.mxu0 0.0
        %1039 = vmatprep.subr.mxu0 0.0
        %1040 = vmatpush1.msra.mxu0 0.0
        %1041 = vmatprep.subr.mxu0 0.0
        %1042 = vmatpush1.msra.mxu0 0.0
        %1043 = vmatprep.subr.mxu0 0.0
        %1044 = vmatpush1.msra.mxu0 0.0
        %1045 = vmatprep.subr.mxu0 0.0
        %1046 = vmatpush1.msra.mxu0 0.0
        %1047 = vmatprep.subr.mxu0 0.0
        %1048 = vmatpush1.msra.mxu0 0.0
        %1049 = vmatprep.mubr.f32.mxu0 0.0
        %1050 = vmatmul.mubr.f32.gmra.mrb[0].mxu0 %v983
        %v1051 = vpop.f32.mrb[0].mxu0
        %v1052 = vadd.f32 0.0, %v1051
        %v1053 = vpop.f32.mrb[0].mxu0
        %1054 = vdwg.mxu0
        %1056 = vrot.lane.b32.xlu0 %v1052, 8
        %v1057 = vpop.permute.xlu0 %1056
        %vm1059 = vcmask 130112
        %1060 = vst.msk [vmem:[#allocation4] sm:$0xff] %vm1059, %v1057
        %v1061 = vld [vmem:[#allocation2] sm:$0xff]
        %v1062 = vld [vmem:[#allocation3] sm:$0xff]
        %1063 = vrot.lane.b32.xlu0 %v716, 112
        %v1064 = vpop.permute.xlu0 %1063
        %1066 = vrot.lane.b32.xlu0 %v1061, 112
        %v1067 = vpop.permute.xlu0 %1066
        %v1068 = vsel %vm721, %v1064, 0
        %v1070 = vsel %vm721, %v1067, 0
        %1072 = vmatprep.subr.mxu0 0.0
        %1073 = vmatpush1.xpose.msra.mxu0 %v1070
        %1074 = vmatprep.subr.mxu0 0.0
        %1075 = vmatpush1.xpose.msra.mxu0 0.0
        %1076 = vmatprep.subr.mxu0 0.0
        %1077 = vmatpush1.xpose.msra.mxu0 0.0
        %1078 = vmatprep.subr.mxu0 0.0
        %1079 = vmatpush1.xpose.msra.mxu0 0.0
        %1080 = vmatprep.subr.mxu0 0.0
        %1081 = vmatpush1.xpose.msra.mxu0 0.0
        %1082 = vmatprep.subr.mxu0 0.0
        %1083 = vmatpush1.xpose.msra.mxu0 0.0
        %1084 = vmatprep.subr.mxu0 0.0
        %1085 = vmatpush1.xpose.msra.mxu0 0.0
        %1086 = vmatprep.subr.mxu0 0.0
        %1087 = vmatpush1.xpose.msra.mxu0 0.0
        %1088 = vmatprep.subr.mxu0 0.0
        %1089 = vmatpush1.xpose.msra.mxu0 0.0
        %1090 = vmatprep.subr.mxu0 0.0
        %1091 = vmatpush1.xpose.msra.mxu0 0.0
        %1092 = vmatprep.subr.mxu0 0.0
        %1093 = vmatpush1.xpose.msra.mxu0 0.0
        %1094 = vmatprep.subr.mxu0 0.0
        %1095 = vmatpush1.xpose.msra.mxu0 0.0
        %1096 = vmatprep.subr.mxu0 0.0
        %1097 = vmatpush1.xpose.msra.mxu0 0.0
        %1098 = vmatprep.subr.mxu0 0.0
        %1099 = vmatpush1.xpose.msra.mxu0 0.0
        %1100 = vmatprep.subr.mxu0 0.0
        %1101 = vmatpush1.xpose.msra.mxu0 0.0
        %1102 = vmatprep.subr.mxu0 0.0
        %1103 = vmatpush1.xpose.msra.mxu0 0.0
        %1104 = vmatprep.subr.mxu0 0.0
        %1105 = vmatpush1.xpose.msra.mxu0 0.0
        %1106 = vmatprep.subr.mxu0 0.0
        %1107 = vmatpush1.xpose.msra.mxu0 0.0
        %1108 = vmatprep.subr.mxu0 0.0
        %1109 = vmatpush1.xpose.msra.mxu0 0.0
        %1110 = vmatprep.subr.mxu0 0.0
        %1111 = vmatpush1.xpose.msra.mxu0 0.0
        %1112 = vmatprep.subr.mxu0 0.0
        %1113 = vmatpush1.xpose.msra.mxu0 0.0
        %1114 = vmatprep.subr.mxu0 0.0
        %1115 = vmatpush1.xpose.msra.mxu0 0.0
        %1116 = vmatprep.subr.mxu0 0.0
        %1117 = vmatpush1.xpose.msra.mxu0 0.0
        %1118 = vmatprep.subr.mxu0 0.0
        %1119 = vmatpush1.xpose.msra.mxu0 0.0
        %1120 = vmatprep.subr.mxu0 0.0
        %1121 = vmatpush1.xpose.msra.mxu0 0.0
        %1122 = vmatprep.subr.mxu0 0.0
        %1123 = vmatpush1.xpose.msra.mxu0 0.0
        %1124 = vmatprep.subr.mxu0 0.0
        %1125 = vmatpush1.xpose.msra.mxu0 0.0
        %1126 = vmatprep.subr.mxu0 0.0
        %1127 = vmatpush1.xpose.msra.mxu0 0.0
        %1128 = vmatprep.subr.mxu0 0.0
        %1129 = vmatpush1.xpose.msra.mxu0 0.0
        %1130 = vmatprep.subr.mxu0 0.0
        %1131 = vmatpush1.xpose.msra.mxu0 0.0
        %1132 = vmatprep.subr.mxu0 0.0
        %1133 = vmatpush1.xpose.msra.mxu0 0.0
        %1134 = vmatprep.subr.mxu0 0.0
        %1135 = vmatpush1.xpose.msra.mxu0 0.0
        %1136 = vmatprep.mubr.f32.mxu0 0.0
        %1137 = vmatmul.mubr.f32.gmra.mrb[0].mxu0 %v1068
        %v1138 = vpop.f32.mrb[0].mxu0
        %v1139 = vadd.f32 0.0, %v1138
        %v1140 = vpop.f32.mrb[0].mxu0
        %1141 = vdwg.mxu0
        %v1142 = vsel %vm721, %v1139, -inf
        %1143 = vmax.xlane.f32.xlu0 %v1142
        %v1144 = vpop.xlane.xlu0 %1143
        %v1145 = vsub.f32 %v1139, %v1144
        %v1146 = vmul.f32 %v1145, 1.442695
        %v1147 = vpow.pop %v1146
        %v1148 = vsel %vm721, %v1147, 0.0
        %1149 = vadd.xlane.f32.xlu0 %v1148
        %v1150 = vpop.xlane.xlu0 %1149
        %v1151 = vrcp.pop %v1150
        %v1152 = vmul.f32 %v1147, %v1151
        %s1153 = scalar_lea.vmem %s459, 16 [#allocation15]
        %1154 = vst.msk [vmem:[%s1153] sm:$0xff] %vm721, %v1152
        %1156 = vrot.lane.b32.xlu0 %v1062, 112
        %v1157 = vpop.permute.xlu0 %1156
        %v1160 = vsel %vm721, %v1152, 0
        %1162 = vmatprep.subr.mxu0 0.0
        %1163 = vmatpush1.msra.mxu0 %v1157
        %1164 = vmatprep.subr.mxu0 0.0
        %1165 = vmatpush1.msra.mxu0 0.0
        %1166 = vmatprep.subr.mxu0 0.0
        %1167 = vmatpush1.msra.mxu0 0.0
        %1168 = vmatprep.subr.mxu0 0.0
        %1169 = vmatpush1.msra.mxu0 0.0
        %1170 = vmatprep.subr.mxu0 0.0
        %1171 = vmatpush1.msra.mxu0 0.0
        %1172 = vmatprep.subr.mxu0 0.0
        %1173 = vmatpush1.msra.mxu0 0.0
        %1174 = vmatprep.subr.mxu0 0.0
        %1175 = vmatpush1.msra.mxu0 0.0
        %1176 = vmatprep.subr.mxu0 0.0
        %1177 = vmatpush1.msra.mxu0 0.0
        %1178 = vmatprep.subr.mxu0 0.0
        %1179 = vmatpush1.msra.mxu0 0.0
        %1180 = vmatprep.subr.mxu0 0.0
        %1181 = vmatpush1.msra.mxu0 0.0
        %1182 = vmatprep.subr.mxu0 0.0
        %1183 = vmatpush1.msra.mxu0 0.0
        %1184 = vmatprep.subr.mxu0 0.0
        %1185 = vmatpush1.msra.mxu0 0.0
        %1186 = vmatprep.subr.mxu0 0.0
        %1187 = vmatpush1.msra.mxu0 0.0
        %1188 = vmatprep.subr.mxu0 0.0
        %1189 = vmatpush1.msra.mxu0 0.0
        %1190 = vmatprep.subr.mxu0 0.0
        %1191 = vmatpush1.msra.mxu0 0.0
        %1192 = vmatprep.subr.mxu0 0.0
        %1193 = vmatpush1.msra.mxu0 0.0
        %1194 = vmatprep.subr.mxu0 0.0
        %1195 = vmatpush1.msra.mxu0 0.0
        %1196 = vmatprep.subr.mxu0 0.0
        %1197 = vmatpush1.msra.mxu0 0.0
        %1198 = vmatprep.subr.mxu0 0.0
        %1199 = vmatpush1.msra.mxu0 0.0
        %1200 = vmatprep.subr.mxu0 0.0
        %1201 = vmatpush1.msra.mxu0 0.0
        %1202 = vmatprep.subr.mxu0 0.0
        %1203 = vmatpush1.msra.mxu0 0.0
        %1204 = vmatprep.subr.mxu0 0.0
        %1205 = vmatpush1.msra.mxu0 0.0
        %1206 = vmatprep.subr.mxu0 0.0
        %1207 = vmatpush1.msra.mxu0 0.0
        %1208 = vmatprep.subr.mxu0 0.0
        %1209 = vmatpush1.msra.mxu0 0.0
        %1210 = vmatprep.subr.mxu0 0.0
        %1211 = vmatpush1.msra.mxu0 0.0
        %1212 = vmatprep.subr.mxu0 0.0
        %1213 = vmatpush1.msra.mxu0 0.0
        %1214 = vmatprep.subr.mxu0 0.0
        %1215 = vmatpush1.msra.mxu0 0.0
        %1216 = vmatprep.subr.mxu0 0.0
        %1217 = vmatpush1.msra.mxu0 0.0
        %1218 = vmatprep.subr.mxu0 0.0
        %1219 = vmatpush1.msra.mxu0 0.0
        %1220 = vmatprep.subr.mxu0 0.0
        %1221 = vmatpush1.msra.mxu0 0.0
        %1222 = vmatprep.subr.mxu0 0.0
        %1223 = vmatpush1.msra.mxu0 0.0
        %1224 = vmatprep.subr.mxu0 0.0
        %1225 = vmatpush1.msra.mxu0 0.0
        %1226 = vmatprep.mubr.f32.mxu0 0.0
        %1227 = vmatmul.mubr.f32.gmra.mrb[0].mxu0 %v1160
        %v1228 = vpop.f32.mrb[0].mxu0
        %v1229 = vadd.f32 0.0, %v1228
        %v1230 = vpop.f32.mrb[0].mxu0
        %1231 = vdwg.mxu0
        %1233 = vrot.lane.b32.xlu0 %v1229, 16
        %v1234 = vpop.permute.xlu0 %1233
        %vm1236 = vcmask 195712
        %1237 = vst.msk [vmem:[#allocation4] sm:$0xff] %vm1236, %v1234
        %v1238 = vld [vmem:[#allocation2] sm:$0xff]
        %v1239 = vld [vmem:[#allocation3] sm:$0xff]
        %1240 = vrot.lane.b32.xlu0 %v716, 104
        %v1241 = vpop.permute.xlu0 %1240
        %1243 = vrot.lane.b32.xlu0 %v1238, 104
        %v1244 = vpop.permute.xlu0 %1243
        %v1245 = vsel %vm721, %v1241, 0
        %v1247 = vsel %vm721, %v1244, 0
        %1249 = vmatprep.subr.mxu0 0.0
        %1250 = vmatpush1.xpose.msra.mxu0 %v1247
        %1251 = vmatprep.subr.mxu0 0.0
        %1252 = vmatpush1.xpose.msra.mxu0 0.0
        %1253 = vmatprep.subr.mxu0 0.0
        %1254 = vmatpush1.xpose.msra.mxu0 0.0
        %1255 = vmatprep.subr.mxu0 0.0
        %1256 = vmatpush1.xpose.msra.mxu0 0.0
        %1257 = vmatprep.subr.mxu0 0.0
        %1258 = vmatpush1.xpose.msra.mxu0 0.0
        %1259 = vmatprep.subr.mxu0 0.0
        %1260 = vmatpush1.xpose.msra.mxu0 0.0
        %1261 = vmatprep.subr.mxu0 0.0
        %1262 = vmatpush1.xpose.msra.mxu0 0.0
        %1263 = vmatprep.subr.mxu0 0.0
        %1264 = vmatpush1.xpose.msra.mxu0 0.0
        %1265 = vmatprep.subr.mxu0 0.0
        %1266 = vmatpush1.xpose.msra.mxu0 0.0
        %1267 = vmatprep.subr.mxu0 0.0
        %1268 = vmatpush1.xpose.msra.mxu0 0.0
        %1269 = vmatprep.subr.mxu0 0.0
        %1270 = vmatpush1.xpose.msra.mxu0 0.0
        %1271 = vmatprep.subr.mxu0 0.0
        %1272 = vmatpush1.xpose.msra.mxu0 0.0
        %1273 = vmatprep.subr.mxu0 0.0
        %1274 = vmatpush1.xpose.msra.mxu0 0.0
        %1275 = vmatprep.subr.mxu0 0.0
        %1276 = vmatpush1.xpose.msra.mxu0 0.0
        %1277 = vmatprep.subr.mxu0 0.0
        %1278 = vmatpush1.xpose.msra.mxu0 0.0
        %1279 = vmatprep.subr.mxu0 0.0
        %1280 = vmatpush1.xpose.msra.mxu0 0.0
        %1281 = vmatprep.subr.mxu0 0.0
        %1282 = vmatpush1.xpose.msra.mxu0 0.0
        %1283 = vmatprep.subr.mxu0 0.0
        %1284 = vmatpush1.xpose.msra.mxu0 0.0
        %1285 = vmatprep.subr.mxu0 0.0
        %1286 = vmatpush1.xpose.msra.mxu0 0.0
        %1287 = vmatprep.subr.mxu0 0.0
        %1288 = vmatpush1.xpose.msra.mxu0 0.0
        %1289 = vmatprep.subr.mxu0 0.0
        %1290 = vmatpush1.xpose.msra.mxu0 0.0
        %1291 = vmatprep.subr.mxu0 0.0
        %1292 = vmatpush1.xpose.msra.mxu0 0.0
        %1293 = vmatprep.subr.mxu0 0.0
        %1294 = vmatpush1.xpose.msra.mxu0 0.0
        %1295 = vmatprep.subr.mxu0 0.0
        %1296 = vmatpush1.xpose.msra.mxu0 0.0
        %1297 = vmatprep.subr.mxu0 0.0
        %1298 = vmatpush1.xpose.msra.mxu0 0.0
        %1299 = vmatprep.subr.mxu0 0.0
        %1300 = vmatpush1.xpose.msra.mxu0 0.0
        %1301 = vmatprep.subr.mxu0 0.0
        %1302 = vmatpush1.xpose.msra.mxu0 0.0
        %1303 = vmatprep.subr.mxu0 0.0
        %1304 = vmatpush1.xpose.msra.mxu0 0.0
        %1305 = vmatprep.subr.mxu0 0.0
        %1306 = vmatpush1.xpose.msra.mxu0 0.0
        %1307 = vmatprep.subr.mxu0 0.0
        %1308 = vmatpush1.xpose.msra.mxu0 0.0
        %1309 = vmatprep.subr.mxu0 0.0
        %1310 = vmatpush1.xpose.msra.mxu0 0.0
        %1311 = vmatprep.subr.mxu0 0.0
        %1312 = vmatpush1.xpose.msra.mxu0 0.0
        %1313 = vmatprep.mubr.f32.mxu0 0.0
        %1314 = vmatmul.mubr.f32.gmra.mrb[0].mxu0 %v1245
        %v1315 = vpop.f32.mrb[0].mxu0
        %v1316 = vadd.f32 0.0, %v1315
        %v1317 = vpop.f32.mrb[0].mxu0
        %1318 = vdwg.mxu0
        %v1319 = vsel %vm721, %v1316, -inf
        %1320 = vmax.xlane.f32.xlu0 %v1319
        %v1321 = vpop.xlane.xlu0 %1320
        %v1322 = vsub.f32 %v1316, %v1321
        %v1323 = vmul.f32 %v1322, 1.442695
        %v1324 = vpow.pop %v1323
        %v1325 = vsel %vm721, %v1324, 0.0
        %1326 = vadd.xlane.f32.xlu0 %v1325
        %v1327 = vpop.xlane.xlu0 %1326
        %v1328 = vrcp.pop %v1327
        %v1329 = vmul.f32 %v1324, %v1328
        %s1330 = scalar_lea.vmem %s459, 24 [#allocation15]
        %1331 = vst.msk [vmem:[%s1330] sm:$0xff] %vm721, %v1329
        %1333 = vrot.lane.b32.xlu0 %v1239, 104
        %v1334 = vpop.permute.xlu0 %1333
        %v1337 = vsel %vm721, %v1329, 0
        %1339 = vmatprep.subr.mxu0 0.0
        %1340 = vmatpush1.msra.mxu0 %v1334
        %1341 = vmatprep.subr.mxu0 0.0
        %1342 = vmatpush1.msra.mxu0 0.0
        %1343 = vmatprep.subr.mxu0 0.0
        %1344 = vmatpush1.msra.mxu0 0.0
        %1345 = vmatprep.subr.mxu0 0.0
        %1346 = vmatpush1.msra.mxu0 0.0
        %1347 = vmatprep.subr.mxu0 0.0
        %1348 = vmatpush1.msra.mxu0 0.0
        %1349 = vmatprep.subr.mxu0 0.0
        %1350 = vmatpush1.msra.mxu0 0.0
        %1351 = vmatprep.subr.mxu0 0.0
        %1352 = vmatpush1.msra.mxu0 0.0
        %1353 = vmatprep.subr.mxu0 0.0
        %1354 = vmatpush1.msra.mxu0 0.0
        %1355 = vmatprep.subr.mxu0 0.0
        %1356 = vmatpush1.msra.mxu0 0.0
        %1357 = vmatprep.subr.mxu0 0.0
        %1358 = vmatpush1.msra.mxu0 0.0
        %1359 = vmatprep.subr.mxu0 0.0
        %1360 = vmatpush1.msra.mxu0 0.0
        %1361 = vmatprep.subr.mxu0 0.0
        %1362 = vmatpush1.msra.mxu0 0.0
        %1363 = vmatprep.subr.mxu0 0.0
        %1364 = vmatpush1.msra.mxu0 0.0
        %1365 = vmatprep.subr.mxu0 0.0
        %1366 = vmatpush1.msra.mxu0 0.0
        %1367 = vmatprep.subr.mxu0 0.0
        %1368 = vmatpush1.msra.mxu0 0.0
        %1369 = vmatprep.subr.mxu0 0.0
        %1370 = vmatpush1.msra.mxu0 0.0
        %1371 = vmatprep.subr.mxu0 0.0
        %1372 = vmatpush1.msra.mxu0 0.0
        %1373 = vmatprep.subr.mxu0 0.0
        %1374 = vmatpush1.msra.mxu0 0.0
        %1375 = vmatprep.subr.mxu0 0.0
        %1376 = vmatpush1.msra.mxu0 0.0
        %1377 = vmatprep.subr.mxu0 0.0
        %1378 = vmatpush1.msra.mxu0 0.0
        %1379 = vmatprep.subr.mxu0 0.0
        %1380 = vmatpush1.msra.mxu0 0.0
        %1381 = vmatprep.subr.mxu0 0.0
        %1382 = vmatpush1.msra.mxu0 0.0
        %1383 = vmatprep.subr.mxu0 0.0
        %1384 = vmatpush1.msra.mxu0 0.0
        %1385 = vmatprep.subr.mxu0 0.0
        %1386 = vmatpush1.msra.mxu0 0.0
        %1387 = vmatprep.subr.mxu0 0.0
        %1388 = vmatpush1.msra.mxu0 0.0
        %1389 = vmatprep.subr.mxu0 0.0
        %1390 = vmatpush1.msra.mxu0 0.0
        %1391 = vmatprep.subr.mxu0 0.0
        %1392 = vmatpush1.msra.mxu0 0.0
        %1393 = vmatprep.subr.mxu0 0.0
        %1394 = vmatpush1.msra.mxu0 0.0
        %1395 = vmatprep.subr.mxu0 0.0
        %1396 = vmatpush1.msra.mxu0 0.0
        %1397 = vmatprep.subr.mxu0 0.0
        %1398 = vmatpush1.msra.mxu0 0.0
        %1399 = vmatprep.subr.mxu0 0.0
        %1400 = vmatpush1.msra.mxu0 0.0
        %1401 = vmatprep.subr.mxu0 0.0
        %1402 = vmatpush1.msra.mxu0 0.0
        %1403 = vmatprep.mubr.f32.mxu0 0.0
        %1404 = vmatmul.mubr.f32.gmra.mrb[0].mxu0 %v1337
        %v1405 = vpop.f32.mrb[0].mxu0
        %v1406 = vadd.f32 0.0, %v1405
        %v1407 = vpop.f32.mrb[0].mxu0
        %1408 = vdwg.mxu0
        %1410 = vrot.lane.b32.xlu0 %v1406, 24
        %v1411 = vpop.permute.xlu0 %1410
        %vm1413 = vcmask 261312
        %1414 = vst.msk [vmem:[#allocation4] sm:$0xff] %vm1413, %v1411
        %v1415 = vld [vmem:[#allocation4] sm:$0xff]
        %v1416 = vld [vmem:[#allocation13] sm:$0xff]
        %v1417 = vld [vmem:[#allocation13 + $0x8] sm:$0xff]
        %v1418 = vld [vmem:[#allocation13 + $0x10] sm:$0xff]
        %v1419 = vld [vmem:[#allocation13 + $0x18] sm:$0xff]
        %v1420 = vld [vmem:[%s8] sm:$0x1]
        %v1422 = vlaneseq
        %v1423 = vshrl.u32 %v1422, 7
        %v1424 = vsub.s32 0, %v1423
        %v1425 = vrot.slane %v1420, %v1424
        %v1428 = vsel %vm645, %v1415, 0
        %1430 = vmatprep.subr.mxu0 0.0
        %1431 = vmatpush1.msra.mxu0 %v1416
        %1432 = vmatprep.subr.mxu0 0.0
        %1433 = vmatpush1.msra.mxu0 %v1417
        %1434 = vmatprep.subr.mxu0 0.0
        %1435 = vmatpush1.msra.mxu0 %v1418
        %1436 = vmatprep.subr.mxu0 0.0
        %1437 = vmatpush1.msra.mxu0 %v1419
        %1438 = vmatprep.subr.mxu0 0.0
        %1439 = vmatpush1.msra.mxu0 0.0
        %1440 = vmatprep.subr.mxu0 0.0
        %1441 = vmatpush1.msra.mxu0 0.0
        %1442 = vmatprep.subr.mxu0 0.0
        %1443 = vmatpush1.msra.mxu0 0.0
        %1444 = vmatprep.subr.mxu0 0.0
        %1445 = vmatpush1.msra.mxu0 0.0
        %1446 = vmatprep.subr.mxu0 0.0
        %1447 = vmatpush1.msra.mxu0 0.0
        %1448 = vmatprep.subr.mxu0 0.0
        %1449 = vmatpush1.msra.mxu0 0.0
        %1450 = vmatprep.subr.mxu0 0.0
        %1451 = vmatpush1.msra.mxu0 0.0
        %1452 = vmatprep.subr.mxu0 0.0
        %1453 = vmatpush1.msra.mxu0 0.0
        %1454 = vmatprep.subr.mxu0 0.0
        %1455 = vmatpush1.msra.mxu0 0.0
        %1456 = vmatprep.subr.mxu0 0.0
        %1457 = vmatpush1.msra.mxu0 0.0
        %1458 = vmatprep.subr.mxu0 0.0
        %1459 = vmatpush1.msra.mxu0 0.0
        %1460 = vmatprep.subr.mxu0 0.0
        %1461 = vmatpush1.msra.mxu0 0.0
        %1462 = vmatprep.subr.mxu0 0.0
        %1463 = vmatpush1.msra.mxu0 0.0
        %1464 = vmatprep.subr.mxu0 0.0
        %1465 = vmatpush1.msra.mxu0 0.0
        %1466 = vmatprep.subr.mxu0 0.0
        %1467 = vmatpush1.msra.mxu0 0.0
        %1468 = vmatprep.subr.mxu0 0.0
        %1469 = vmatpush1.msra.mxu0 0.0
        %1470 = vmatprep.subr.mxu0 0.0
        %1471 = vmatpush1.msra.mxu0 0.0
        %1472 = vmatprep.subr.mxu0 0.0
        %1473 = vmatpush1.msra.mxu0 0.0
        %1474 = vmatprep.subr.mxu0 0.0
        %1475 = vmatpush1.msra.mxu0 0.0
        %1476 = vmatprep.subr.mxu0 0.0
        %1477 = vmatpush1.msra.mxu0 0.0
        %1478 = vmatprep.subr.mxu0 0.0
        %1479 = vmatpush1.msra.mxu0 0.0
        %1480 = vmatprep.subr.mxu0 0.0
        %1481 = vmatpush1.msra.mxu0 0.0
        %1482 = vmatprep.subr.mxu0 0.0
        %1483 = vmatpush1.msra.mxu0 0.0
        %1484 = vmatprep.subr.mxu0 0.0
        %1485 = vmatpush1.msra.mxu0 0.0
        %1486 = vmatprep.subr.mxu0 0.0
        %1487 = vmatpush1.msra.mxu0 0.0
        %1488 = vmatprep.subr.mxu0 0.0
        %1489 = vmatpush1.msra.mxu0 0.0
        %1490 = vmatprep.subr.mxu0 0.0
        %1491 = vmatpush1.msra.mxu0 0.0
        %1492 = vmatprep.subr.mxu0 0.0
        %1493 = vmatpush1.msra.mxu0 0.0
        %1494 = vmatprep.mubr.f32.mxu0 0.0
        %1495 = vmatmul.mubr.f32.gmra.mrb[0].mxu0 %v1428
        %v1496 = vpop.f32.mrb[0].mxu0
        %v1497 = vadd.f32 %v1425, %v1496
        %v1498 = vpop.f32.mrb[0].mxu0
        %1499 = vdwg.mxu0
        %1500 = vst.msk [vmem:[%s452] sm:$0xff] %vm645, %v1497
        %s1501 = sand.u32 %s249, 1
        %s1502 = scalar_lea.sflag [#allocation7], %s1501
        %s1503 = sand.u32 %s249, 1
        %s1504 = smul.addr %s1503, 8
        %s1505 = scalar_lea.vmem [#allocation14], %s1504
        %s1506 = sand.u32 %s277, 1
        %s1507 = scalar_lea.sflag [#allocation16], %s1506
        %s1508 = sand.u32 %s277, 1
        %s1509 = smul.addr %s1508, 32
        %s1510 = scalar_lea.vmem [#allocation15], %s1509
        // Predicated region
        $region81: #{tpu_custom_call.1} parent=55 // pred_check
          %p1511 = pneg %p259
        $region82: #{tpu_custom_call.1} parent=55 // pred_check_branch
          %1513 = sbr.rel (%p1511) target = $region84
        $region83: #{tpu_custom_call.1} parent=55 // pred_region
          %s1515 = ssub.s32 128, 128
          %1516 = vsyncadd %s1502, %s1515
          %s1517 = sadd.s32 %s38, %s37
          %s1518 = smul.addr %s1517, 128
          %s1519 = scalar_lea.hbm %s9, %s1518
          %s1521 = sshll.u32 %s1505, 4
          %s1522 = int_to_ptr.vmem [resolvable:$true] %s1521
          %1524 = dma.vmem_to_hbm [thread:$0]  %s1522, 128, %s1519, %s1502
        $region84: #{tpu_custom_call.1} parent=55 // pred_fallthru
          _
        // Predicated region
        $region85: #{tpu_custom_call.1} parent=55 // pred_check
          %p1525 = pneg %p287
        $region86: #{tpu_custom_call.1} parent=55 // pred_check_branch
          %1527 = sbr.rel (%p1525) target = $region88
        $region87: #{tpu_custom_call.1} parent=55 // pred_region
          %s1529 = ssub.s32 512, 512
          %1530 = vsyncadd %s1507, %s1529
          %s1531 = smul.addr %s37, 4
          %s1532 = sadd.s32 %s38, %s1531
          %s1533 = smul.addr %s1532, 128
          %s1534 = scalar_lea.hbm %s10, %s1533
          %s1535 = sshll.u32 %s1510, 4
          %s1536 = int_to_ptr.vmem [resolvable:$true] %s1535
          %1541 = dma.vmem_to_hbm [thread:$0]  %s1536, 512, %s1534, %s1507, 128, 128, 8
        $region88: #{tpu_custom_call.1} parent=55 // pred_fallthru
          _
      $region56: #{tpu_custom_call.1} parent=5 // pred_fallthru
        _
      %p1542 = scmp.le.s32.totalorder 2, %s28
      // Predicated region
      $region89: #{tpu_custom_call.1} parent=5 // pred_check
        %p1543 = pneg %p1542
      $region90: #{tpu_custom_call.1} parent=5 // pred_check_branch
        %1545 = sbr.rel (%p1543) target = $region92
      $region91: #{tpu_custom_call.1} parent=5 // pred_region
        %s1546 = ssub.s32 %s28, 2
        // Predicated region
        $region93: #{tpu_custom_call.1} parent=91 // pred_check
          %p1547 = pneg %p265
        $region94: #{tpu_custom_call.1} parent=91 // pred_check_branch
          %1549 = sbr.rel (%p1547) target = $region96
        $region95: #{tpu_custom_call.1} parent=91 // pred_region
          %s1550 = sand.u32 %s250, 1
          %s1551 = scalar_lea.sflag [#allocation7], %s1550
          %s1552 = sand.u32 %s250, 1
          %s1553 = smul.addr %s1552, 8
          %s1554 = scalar_lea.vmem [#allocation14], %s1553
          %1555 = dma.done %s1551, 128
        $region96: #{tpu_custom_call.1} parent=91 // pred_fallthru
          _
        // Predicated region
        $region97: #{tpu_custom_call.1} parent=91 // pred_check
          %p1556 = pneg %p293
        $region98: #{tpu_custom_call.1} parent=91 // pred_check_branch
          %1558 = sbr.rel (%p1556) target = $region100
        $region99: #{tpu_custom_call.1} parent=91 // pred_region
          %s1559 = sand.u32 %s278, 1
          %s1560 = scalar_lea.sflag [#allocation16], %s1559
          %s1561 = sand.u32 %s278, 1
          %s1562 = smul.addr %s1561, 32
          %s1563 = scalar_lea.vmem [#allocation15], %s1562
          %1564 = dma.done %s1560, 512
        $region100: #{tpu_custom_call.1} parent=91 // pred_fallthru
          _
      $region92: #{tpu_custom_call.1} parent=5 // pred_fallthru
        _
    $region6: #{tpu_custom_call.1} parent=1 // loop_footer
      %s32 = sadd.s32 1, %s28
    $region7: #{tpu_custom_call.1} parent=1 // loop_footer_branch
      %27 = sbr.rel target = $region3
    $region8: #{tpu_custom_call.1} parent=1 // loop_exit
      _
    %1565 = vsyncpa [#allocation6], 1
    %s1566 = scalar_lea.sflag [#allocation6], 1
    %1567 = vsyncpa %s1566, 1
    %1568 = vsyncpa [#allocation9], 1
    %1569 = vsyncpa [#allocation12], 1
    %1570 = vsyncpa [#allocation7], 1
    %s1571 = scalar_lea.sflag [#allocation7], 1
    %1572 = vsyncpa %s1571, 1
    %1573 = vsyncpa [#allocation16], 1
    %s1574 = scalar_lea.sflag [#allocation16], 1
    %1575 = vsyncpa %s1574, 1

</llo_original>
